<compile_context>
chip_gen: v7x
topology: tpu7x:2x2x1
jax: 0.10.0
libtpu: 0.0.40
codegen_flags: <defaults>
</compile_context>

<pallas_src>
import math
import functools

import jax
import jax.numpy as jnp
from jax import lax
from jax.experimental import pallas as pl
from jax.experimental.pallas import tpu as pltpu


_STACK_ORDER = ("wqkv", "bqkv", "wo", "bo", "w1", "b1", "w2", "b2",
                "g1", "be1", "g2", "be2")


def _layer_norm(z, gamma, beta, eps=1e-6):
    mean = jnp.mean(z, axis=-1, keepdims=True)
    var = jnp.mean((z - mean) ** 2, axis=-1, keepdims=True)
    return (z - mean) * lax.rsqrt(var + eps) * gamma + beta


def _tensorcores_per_chip():
    """Best-effort TensorCore-per-chip detection.  Single-TC chips (v5e/v6e)
    must keep BB == B: splitting the batch only re-streams every layer's
    weights from HBM once per extra block and doubles per-step overhead."""
    try:
        info = pltpu.get_tpu_info()
    except Exception:
        return 1
    for attr in ("num_cores", "num_tensorcores", "tensorcores_per_chip",
                 "core_count"):
        v = getattr(info, attr, None)
        if isinstance(v, int) and v > 0:
            return v
    return 1


# ----------------------------- Pallas kernel ------------------------------ #

def encoder_stack_kernel(x_ref, bias_ref,
                         wqkv_ref, bqkv_ref, wo_ref, bo_ref,
                         w1_ref, b1_ref, w2_ref, b2_ref,
                         g1_ref, be1_ref, g2_ref, be2_ref,
                         o_ref, act_ref, qkv_ref, ctx_ref,
                         *, heads, ffn_chunk):
    """One grid step = (one batch block) x (one encoder layer).

    grid = (num_batch_blocks [parallel], n_layer [arbitrary]).  The residual
    stream lives in the f32 VMEM scratch `act_ref` across the layer axis; the
    fused QKV projection lives in the bf16 scratch `qkv_ref`; head contexts are
    assembled in the bf16 scratch `ctx_ref`.
    """
    layer = pl.program_id(1)
    n_layers = pl.num_programs(1)
    BB, S, E = x_ref.shape
    M = BB * S
    dh = E // heads
    F = w1_ref.shape[-1]

    # Layer 0 of this batch block: load the embeddings into the VMEM carry.
    @pl.when(layer == 0)
    def _():
        act_ref[...] = x_ref[...].reshape(M, E).astype(jnp.float32)

    x2d = act_ref[...]                                   # (M, E) f32 residual
    xb = x2d.astype(jnp.bfloat16)

    # ---- fused QKV projection: one wide bf16 MXU pass over all B*S rows ----
    # (1/sqrt(dh) is already folded into the Q columns of wqkv host-side.)
    # Cast once to bf16 and park it in VMEM; per-head tiles are sliced from the
    # ref below so no (M, 3E) value stays live across the attention loop.
    qkv = jnp.dot(xb, wqkv_ref[0], preferred_element_type=jnp.float32) + bqkv_ref[0]
    qkv_ref[...] = qkv.astype(jnp.bfloat16)

    # Additive key-padding bias (0 / -1e9), precomputed host-side: no per-layer
    # compare/select and no explicit (S, S) broadcast — the add broadcasts.
    bias = bias_ref[...]                                 # (BB, 1, S) f32

    for h in range(heads):                               # static: heads is small
        lo = h * dh
        qh = qkv_ref[:, lo:lo + dh].reshape(BB, S, dh)
        kh = qkv_ref[:, E + lo:E + lo + dh].reshape(BB, S, dh)
        vh = qkv_ref[:, 2 * E + lo:2 * E + lo + dh].reshape(BB, S, dh)

        # batched over the batch dim (flash-attention style einsum, MXU, f32 acc)
        s = jnp.einsum("bqd,bkd->bqk", qh, kh,
                       preferred_element_type=jnp.float32) + bias
        s = s - jnp.max(s, axis=-1, keepdims=True)
        p = jnp.exp(s)
        p = p * pl.reciprocal(jnp.sum(p, axis=-1, keepdims=True), approx=True)
        ctx_h = jnp.einsum("bqk,bkd->bqd", p.astype(jnp.bfloat16), vh,
                           preferred_element_type=jnp.float32)
        # TODO(synk): group adjacent heads into >=128-lane slabs before storing
        # (v6e masked-vst path); this store is dh lanes wide per head.
        ctx_ref[:, lo:lo + dh] = ctx_h.reshape(M, dh).astype(jnp.bfloat16)

    attn = jnp.dot(ctx_ref[...], wo_ref[0],
                   preferred_element_type=jnp.float32) + bo_ref[0]

    y = _layer_norm(x2d + attn, g1_ref[0], be1_ref[0])
    yb = y.astype(jnp.bfloat16)

    # ---- position-wise FFN, chunked over the hidden dim -------------------
    # h1 is only (M, ffn_chunk) f32 at a time; w1/w2 are sliced from their refs.
    b1 = b1_ref[0]                                       # (1, F) f32 (tiny)
    ffn = None
    for c0 in range(0, F, ffn_chunk):
        fc = min(ffn_chunk, F - c0)
        h1 = jnp.maximum(
            jnp.dot(yb, w1_ref[0, :, c0:c0 + fc],
                    preferred_element_type=jnp.float32) + b1[:, c0:c0 + fc],
            0.0)
        part = jnp.dot(h1.astype(jnp.bfloat16), w2_ref[0, c0:c0 + fc, :],
                       preferred_element_type=jnp.float32)
        ffn = part if ffn is None else ffn + part
    ffn = ffn + b2_ref[0]

    out = _layer_norm(y + ffn, g2_ref[0], be2_ref[0])

    @pl.when(layer < n_layers - 1)
    def _():
        act_ref[...] = out                               # carry to next layer

    @pl.when(layer == n_layers - 1)
    def _():
        o_ref[...] = out.reshape(BB, S, E).astype(o_ref.dtype)


def encoder_forward(x, bias, stacked, heads, *, batch_block=None):
    """x: (B, S, E) f32 embeddings; bias: (B, 1, S) f32 additive mask (0/-1e9)."""
    B, S, E = x.shape
    L = stacked["wqkv"].shape[0]
    F = stacked["w1"].shape[-1]
    BB = B if batch_block is None else batch_block
    assert B % BB == 0, (B, BB)
    M = BB * S
    FC = min(F, 1024)                                    # FFN hidden-dim chunk

    def wspec(name):
        arr = stacked[name]
        blk = (1,) + arr.shape[1:]
        nd = arr.ndim
        return pl.BlockSpec(blk, lambda bb, l, _nd=nd: (l,) + (0,) * (_nd - 1))

    in_specs = [
        # TODO(synk): mark these two pipeline_mode=pl.Buffered(1) (only read at
        # layer 0, block index constant over the layer axis) to drop their
        # redundant double buffers once single-buffered specs are available.
        pl.BlockSpec((BB, S, E), lambda bb, l: (bb, 0, 0)),   # embeddings
        pl.BlockSpec((BB, 1, S), lambda bb, l: (bb, 0, 0)),   # additive key bias
    ] + [wspec(name) for name in _STACK_ORDER]

    # Size the scoped-VMEM limit from the fused residency: persistent scratches
    # + double-buffered per-layer weights + transient f32 values.  Clamp to
    # 64 MiB so the value is valid on every generation (v7x physical = 64 MiB).
    w_bytes = sum(math.prod(a.shape[1:]) * a.dtype.itemsize
                  for a in stacked.values())
    est = (M * E * 4                          # f32 residual carry
           + M * 3 * E * 2                    # bf16 QKV scratch
           + M * E * 2                        # bf16 context scratch
           + 2 * w_bytes                      # double-buffered per-layer weights
           + 4 * BB * S * E * 4               # in/out activation blocks (x2 buf)
           + 2 * BB * S * 4                   # bias blocks
           + M * (3 * E + FC + 3 * E) * 4)    # transient f32 values (qkv/h1/y/ffn)
    vmem_limit = int(min(64 * 1024 * 1024,
                         max(32 * 1024 * 1024, int(est * 1.25))))

    return pl.pallas_call(
        functools.partial(encoder_stack_kernel, heads=heads, ffn_chunk=FC),
        out_shape=jax.ShapeDtypeStruct((B, S, E), x.dtype),
        grid_spec=pltpu.PrefetchScalarGridSpec(
            num_scalar_prefetch=0,
            grid=(B // BB, L),
            in_specs=in_specs,
            out_specs=pl.BlockSpec((BB, S, E), lambda bb, l: (bb, 0, 0)),
            scratch_shapes=[
                pltpu.VMEM((M, E), jnp.float32),      # residual carry
                pltpu.VMEM((M, 3 * E), jnp.bfloat16),  # fused QKV
                pltpu.VMEM((M, E), jnp.bfloat16),      # attention context
            ],
        ),
        # Batch blocks are independent ("parallel", only split on multi-TC
        # chips); the layer axis carries the VMEM-resident activations so it
        # stays sequential ("arbitrary").
        compiler_params=pltpu.CompilerParams(
            dimension_semantics=("parallel", "arbitrary"),
            vmem_limit_bytes=vmem_limit),
    )(x, bias, *[stacked[name] for name in _STACK_ORDER])


# ------------------------------ Encoder glue ------------------------------ #

def sinusoidal_pos_encoding(seq_len, d_model):
    pos = jnp.arange(seq_len, dtype=jnp.float32)[:, None]
    i = jnp.arange(d_model)[None, :]
    rates = 1.0 / jnp.power(10000.0, (2 * (i // 2)).astype(jnp.float32) / d_model)
    ang = pos * rates
    return jnp.where(i % 2 == 0, jnp.sin(ang), jnp.cos(ang)).astype(jnp.float32)


def _encoder_apply(embedding_table, pos_enc, stacked, src_data, src_mask,
                   *, heads, batch_block):
    # TODO(synk): fuse the embedding gather + positional add into the kernel
    # (scalar-prefetch src ids + pl.Element row gather at layer 0) to avoid one
    # HBM round-trip of the (B,S,E) activations.
    x = embedding_table[src_data] + pos_enc[None, :, :]
    # Precompute the additive key-padding bias host-side (review: no per-layer
    # compare/select inside the kernel).
    bias = jnp.where(src_mask > 0.0, 0.0, -1e9).astype(jnp.float32)
    return encoder_forward(x, bias, stacked, heads, batch_block=batch_block)


class Encoder:
    VOCAB = 30000

    def __init__(self, batch_size, seq_len, embedding_size, heads, n_layer, key):
        self.seq_len = seq_len
        self.embedding_size = embedding_size
        self.heads = heads
        self.batch_size = batch_size
        self.n_layer = n_layer

        E = embedding_size
        F = 4 * E                      # FFN hidden size
        dh = E // heads
        scale = 1.0 / math.sqrt(dh)

        key, ek = jax.random.split(key)
        # sqrt(E) embedding scale folded into the table host-side.
        self.embedding_table = (0.02 * jax.random.normal(ek, (self.VOCAB, E), jnp.float32)
                                * math.sqrt(E))
        self.pos_enc = sinusoidal_pos_encoding(seq_len, E)

        def make_layer_params(k):
            ks = jax.random.split(k, 6)
            wq = 0.02 * jax.random.normal(ks[0], (E, E), jnp.float32)
            wk = 0.02 * jax.random.normal(ks[1], (E, E), jnp.float32)
            wv = 0.02 * jax.random.normal(ks[2], (E, E), jnp.float32)
            return {
                # fused QKV, 1/sqrt(dh) folded into the Q block, bf16 weights
                "wqkv": jnp.concatenate([wq * scale, wk, wv], axis=1).astype(jnp.bfloat16),
                "bqkv": jnp.zeros((1, 3 * E), jnp.float32),
                "wo": (0.02 * jax.random.normal(ks[3], (E, E), jnp.float32)).astype(jnp.bfloat16),
                "bo": jnp.zeros((1, E), jnp.float32),
                "w1": (0.02 * jax.random.normal(ks[4], (E, F), jnp.float32)).astype(jnp.bfloat16),
                "b1": jnp.zeros((1, F), jnp.float32),
                "w2": (0.02 * jax.random.normal(ks[5], (F, E), jnp.float32)).astype(jnp.bfloat16),
                "b2": jnp.zeros((1, E), jnp.float32),
                "g1": jnp.ones((1, E), jnp.float32),
                "be1": jnp.zeros((1, E), jnp.float32),
                "g2": jnp.ones((1, E), jnp.float32),
                "be2": jnp.zeros((1, E), jnp.float32),
            }

        layer_keys = jax.random.split(key, n_layer)
        layer_params = [make_layer_params(k) for k in layer_keys]
        # Stack per-layer weights -> (n_layer, ...) so a single pallas_call
        # iterates over layers and pipelines the per-layer weight DMAs.
        self.stacked = {name: jnp.stack([p[name] for p in layer_params], axis=0)
                        for name in _STACK_ORDER}

        # Only split the batch when the chip actually has >= 2 TensorCores
        # (v7x); single-TC v5e/v6e keep BB = B (splitting would re-stream all
        # layer weights once per extra block with zero parallelism gain).
        cores = _tensorcores_per_chip()
        bb = batch_size
        if (cores >= 2 and batch_size % cores == 0
                and (batch_size // cores) * seq_len >= 256):
            bb = batch_size // cores
        self.batch_block = bb

        self._apply = jax.jit(functools.partial(
            _encoder_apply, heads=self.heads, batch_block=self.batch_block))

    def __call__(self, src_data, src_mask):
        # The reference forward also computes layer_norm(dropout(emb)) into a
        # local that is then discarded; it never affects the return value.
        return self._apply(self.embedding_table, self.pos_enc, self.stacked,
                           src_data, src_mask)


# --------------------------- plain-JAX reference --------------------------- #

def _reference_forward(x, mask, stacked, heads):
    B, S, E = x.shape
    dh = E // heads
    L = stacked["wqkv"].shape[0]
    bias = jnp.where(mask > 0.0, 0.0, -1e9)[:, :, None, :]      # (B,1,1,S)
    cur = x.reshape(B * S, E)
    for l in range(L):
        qkv = cur @ stacked["wqkv"][l].astype(jnp.float32) + stacked["bqkv"][l]
        q = qkv[:, :E].reshape(B, S, heads, dh)
        k = qkv[:, E:2 * E].reshape(B, S, heads, dh)
        v = qkv[:, 2 * E:].reshape(B, S, heads, dh)
        s = jnp.einsum("bqhd,bkhd->bhqk", q, k) + bias
        p = jax.nn.softmax(s, axis=-1)
        ctx = jnp.einsum("bhqk,bkhd->bqhd", p, v).reshape(B * S, E)
        attn = ctx @ stacked["wo"][l].astype(jnp.float32) + stacked["bo"][l]
        y = _layer_norm(cur + attn, stacked["g1"][l], stacked["be1"][l])
        h1 = jnp.maximum(y @ stacked["w1"][l].astype(jnp.float32) + stacked["b1"][l], 0.0)
        ffn = h1 @ stacked["w2"][l].astype(jnp.float32) + stacked["b2"][l]
        cur = _layer_norm(y + ffn, stacked["g2"][l], stacked["be2"][l])
    return cur.reshape(B, S, E)


# --------------------------------- main ----------------------------------- #

if __name__ == "__main__":
    BATCH, SEQ, EMB, HEADS, NLAYER = 2, 8, 32, 4, 2

    key = jax.random.PRNGKey(0)
    key, pkey, tkey = jax.random.split(key, 3)

    encoder = Encoder(BATCH, SEQ, EMB, HEADS, NLAYER, pkey)

    src_data = jax.random.randint(tkey, (BATCH, SEQ), 0, Encoder.VOCAB, dtype=jnp.int32)
    # key-padding mask: (B, 1, S), 1.0 = attend, 0.0 = masked
    src_mask = jnp.ones((BATCH, 1, SEQ), jnp.float32)
    src_mask = src_mask.at[1, 0, 6:].set(0.0)   # mask last two key positions of batch 1

    out = jax.block_until_ready(encoder(src_data, src_mask))

    assert out.shape == (BATCH, SEQ, EMB), out.shape
    assert bool(jnp.all(jnp.isfinite(out)))

    # Loose sanity check vs. an f32 reference (kernel uses bf16 matmul inputs
    # and an approximate softmax reciprocal, so the tolerance is generous).
    x_emb = encoder.embedding_table[src_data] + encoder.pos_enc[None, :, :]
    ref = _reference_forward(x_emb, src_mask, encoder.stacked, HEADS)
    max_err = float(jnp.max(jnp.abs(out.astype(jnp.float32) - ref)))
    assert max_err < 0.2, max_err

    print("KERNEL_OK")
</pallas_src>

<mosaic_0001>
module attributes {stable_mosaic.version = 11 : i64} {
  func.func @encoder_stack_kernel(%arg0: i32, %arg1: i32, %arg2: memref<2x8x32xf32, #tpu.memory_space<vmem>>, %arg3: memref<2x1x8xf32, #tpu.memory_space<vmem>>, %arg4: memref<1x32x96xbf16, #tpu.memory_space<vmem>>, %arg5: memref<1x1x96xf32, #tpu.memory_space<vmem>>, %arg6: memref<1x32x32xbf16, #tpu.memory_space<vmem>>, %arg7: memref<1x1x32xf32, #tpu.memory_space<vmem>>, %arg8: memref<1x32x128xbf16, #tpu.memory_space<vmem>>, %arg9: memref<1x1x128xf32, #tpu.memory_space<vmem>>, %arg10: memref<1x128x32xbf16, #tpu.memory_space<vmem>>, %arg11: memref<1x1x32xf32, #tpu.memory_space<vmem>>, %arg12: memref<1x1x32xf32, #tpu.memory_space<vmem>>, %arg13: memref<1x1x32xf32, #tpu.memory_space<vmem>>, %arg14: memref<1x1x32xf32, #tpu.memory_space<vmem>>, %arg15: memref<1x1x32xf32, #tpu.memory_space<vmem>>, %arg16: memref<2x8x32xf32, #tpu.memory_space<vmem>>, %arg17: memref<16x32xf32, #tpu.memory_space<vmem>>, %arg18: memref<16x96xbf16, #tpu.memory_space<vmem>>, %arg19: memref<16x32xbf16, #tpu.memory_space<vmem>>) attributes {dimension_semantics = [#tpu.dimension_semantics<parallel>, #tpu.dimension_semantics<arbitrary>], iteration_bounds = array<i64: 1, 2>, scalar_prefetch = 0 : i64, scratch_operands = 3 : i64, tpu.core_type = #tpu.core_type<tc>, window_params = [{transform_indices = @transform_0, window_bounds = array<i64: 2, 8, 32>}, {transform_indices = @transform_1, window_bounds = array<i64: 2, 1, 8>}, {transform_indices = @transform_2, window_bounds = array<i64: 1, 32, 96>}, {transform_indices = @transform_3, window_bounds = array<i64: 1, 1, 96>}, {transform_indices = @transform_4, window_bounds = array<i64: 1, 32, 32>}, {transform_indices = @transform_5, window_bounds = array<i64: 1, 1, 32>}, {transform_indices = @transform_6, window_bounds = array<i64: 1, 32, 128>}, {transform_indices = @transform_7, window_bounds = array<i64: 1, 1, 128>}, {transform_indices = @transform_8, window_bounds = array<i64: 1, 128, 32>}, {transform_indices = @transform_9, window_bounds = array<i64: 1, 1, 32>}, {transform_indices = @transform_10, window_bounds = array<i64: 1, 1, 32>}, {transform_indices = @transform_11, window_bounds = array<i64: 1, 1, 32>}, {transform_indices = @transform_12, window_bounds = array<i64: 1, 1, 32>}, {transform_indices = @transform_13, window_bounds = array<i64: 1, 1, 32>}, {transform_indices = @transform_14, window_bounds = array<i64: 2, 8, 32>}]} {
    %c0_i32 = arith.constant 0 : i32
    %0 = arith.cmpi eq, %arg1, %c0_i32 : i32
    %1 = arith.extui %0 : i1 to i32
    %c0_i32_0 = arith.constant 0 : i32
    %2 = arith.cmpi ne, %1, %c0_i32_0 : i32
    scf.if %2 {
      %c0_99 = arith.constant 0 : index
      %c0_100 = arith.constant 0 : index
      %c0_101 = arith.constant 0 : index
      %197 = vector.load %arg2[%c0_99, %c0_100, %c0_101] : memref<2x8x32xf32, #tpu.memory_space<vmem>>, vector<2x8x32xf32>
      %198 = vector.shape_cast %197 : vector<2x8x32xf32> to vector<16x32xf32>
      %c0_102 = arith.constant 0 : index
      %c0_103 = arith.constant 0 : index
      %199 = vector.load %arg17[%c0_102, %c0_103] : memref<16x32xf32, #tpu.memory_space<vmem>>, vector<16x32xf32>
      tpu.vector_store %arg17[%c0_102, %c0_103], %198 {strides = array<i32>} : memref<16x32xf32, #tpu.memory_space<vmem>>, vector<16x32xf32>,
    } else {
    }
    %c0 = arith.constant 0 : index
    %c0_1 = arith.constant 0 : index
    %3 = vector.load %arg17[%c0, %c0_1] : memref<16x32xf32, #tpu.memory_space<vmem>>, vector<16x32xf32>
    %4 = arith.truncf %3 : vector<16x32xf32> to vector<16x32xbf16>
    %c0_2 = arith.constant 0 : index
    %c0_3 = arith.constant 0 : index
    %c0_4 = arith.constant 0 : index
    %5 = vector.load %arg4[%c0_2, %c0_3, %c0_4] : memref<1x32x96xbf16, #tpu.memory_space<vmem>>, vector<1x32x96xbf16>
    %6 = vector.shape_cast %5 : vector<1x32x96xbf16> to vector<32x96xbf16>
    %cst = arith.constant dense<0.000000e+00> : vector<16x96xf32>
    %7 = tpu.matmul %4, %6, %cst {dimension_numbers = #tpu.dot_dimension_numbers<[1], [0], [0], [1], [0, 0, 1, 1], [], []>} : vector<16x32xbf16>, vector<32x96xbf16>, vector<16x96xf32> -> vector<16x96xf32>
    %c0_5 = arith.constant 0 : index
    %c0_6 = arith.constant 0 : index
    %c0_7 = arith.constant 0 : index
    %8 = vector.load %arg5[%c0_5, %c0_6, %c0_7] : memref<1x1x96xf32, #tpu.memory_space<vmem>>, vector<1x1x96xf32>
    %9 = vector.shape_cast %8 : vector<1x1x96xf32> to vector<1x96xf32>
    %10 = vector.broadcast %9 : vector<1x96xf32> to vector<16x96xf32>
    %11 = arith.addf %7, %10 : vector<16x96xf32>
    %12 = arith.truncf %11 : vector<16x96xf32> to vector<16x96xbf16>
    %c0_8 = arith.constant 0 : index
    %c0_9 = arith.constant 0 : index
    %13 = vector.load %arg18[%c0_8, %c0_9] : memref<16x96xbf16, #tpu.memory_space<vmem>>, vector<16x96xbf16>
    tpu.vector_store %arg18[%c0_8, %c0_9], %12 {strides = array<i32>} : memref<16x96xbf16, #tpu.memory_space<vmem>>, vector<16x96xbf16>,
    %c0_10 = arith.constant 0 : index
    %c0_11 = arith.constant 0 : index
    %c0_12 = arith.constant 0 : index
    %14 = vector.load %arg3[%c0_10, %c0_11, %c0_12] : memref<2x1x8xf32, #tpu.memory_space<vmem>>, vector<2x1x8xf32>
    %c0_13 = arith.constant 0 : index
    %c0_14 = arith.constant 0 : index
    %15 = vector.load %arg18[%c0_13, %c0_14] : memref<16x96xbf16, #tpu.memory_space<vmem>>, vector<16x8xbf16>
    %16 = vector.shape_cast %15 : vector<16x8xbf16> to vector<2x8x8xbf16>
    %c0_15 = arith.constant 0 : index
    %c32 = arith.constant 32 : index
    %17 = vector.load %arg18[%c0_15, %c32] : memref<16x96xbf16, #tpu.memory_space<vmem>>, vector<16x8xbf16>
    %18 = vector.shape_cast %17 : vector<16x8xbf16> to vector<2x8x8xbf16>
    %c0_16 = arith.constant 0 : index
    %c64 = arith.constant 64 : index
    %19 = vector.load %arg18[%c0_16, %c64] : memref<16x96xbf16, #tpu.memory_space<vmem>>, vector<16x8xbf16>
    %20 = vector.shape_cast %19 : vector<16x8xbf16> to vector<2x8x8xbf16>
    "tpu.trace_start"() <{level = 10 : i32, message = "bqd,bkd->bqk"}> : () -> ()
    %cst_17 = arith.constant dense<0.000000e+00> : vector<2x8x8xf32>
    %21 = tpu.matmul %16, %18, %cst_17 {dimension_numbers = #tpu.dot_dimension_numbers<[2], [2], [1], [1], [0, 0, 0, 1, 1, 1], [0], [0]>} : vector<2x8x8xbf16>, vector<2x8x8xbf16>, vector<2x8x8xf32> -> vector<2x8x8xf32>
    "tpu.trace_stop"() : () -> ()
    %22 = vector.broadcast %14 : vector<2x1x8xf32> to vector<2x8x8xf32>
    %23 = arith.addf %21, %22 : vector<2x8x8xf32>
    %cst_18 = arith.constant dense<0xFF800000> : vector<2x8xf32>
    %24 = vector.multi_reduction <maximumf>, %23, %cst_18 [2] : vector<2x8x8xf32> to vector<2x8xf32>
    %25 = vector.shape_cast %24 : vector<2x8xf32> to vector<2x8x1xf32>
    %26 = vector.broadcast %25 : vector<2x8x1xf32> to vector<2x8x8xf32>
    %27 = arith.subf %23, %26 : vector<2x8x8xf32>
    %28 = math.exp %27 : vector<2x8x8xf32>
    %cst_19 = arith.constant dense<0.000000e+00> : vector<2x8xf32>
    %29 = vector.multi_reduction <add>, %28, %cst_19 [2] : vector<2x8x8xf32> to vector<2x8xf32>
    %30 = vector.shape_cast %29 : vector<2x8xf32> to vector<2x8x1xf32>
    %31 = tpu.reciprocal %30 {approx = true} : vector<2x8x1xf32> -> vector<2x8x1xf32>
    %32 = vector.broadcast %31 : vector<2x8x1xf32> to vector<2x8x8xf32>
    %33 = arith.mulf %28, %32 : vector<2x8x8xf32>
    %34 = arith.truncf %33 : vector<2x8x8xf32> to vector<2x8x8xbf16>
    "tpu.trace_start"() <{level = 10 : i32, message = "bqk,bkd->bqd"}> : () -> ()
    %cst_20 = arith.constant dense<0.000000e+00> : vector<2x8x8xf32>
    %35 = tpu.matmul %34, %20, %cst_20 {dimension_numbers = #tpu.dot_dimension_numbers<[2], [1], [1], [2], [0, 0, 0, 1, 1, 2], [0], [0]>} : vector<2x8x8xbf16>, vector<2x8x8xbf16>, vector<2x8x8xf32> -> vector<2x8x8xf32>
    "tpu.trace_stop"() : () -> ()
    %36 = vector.shape_cast %35 : vector<2x8x8xf32> to vector<16x8xf32>
    %37 = arith.truncf %36 : vector<16x8xf32> to vector<16x8xbf16>
    %c0_21 = arith.constant 0 : index
    %c0_22 = arith.constant 0 : index
    %38 = vector.load %arg19[%c0_21, %c0_22] : memref<16x32xbf16, #tpu.memory_space<vmem>>, vector<16x8xbf16>
    tpu.vector_store %arg19[%c0_21, %c0_22], %37 {strides = array<i32>} : memref<16x32xbf16, #tpu.memory_space<vmem>>, vector<16x8xbf16>,
    %c0_23 = arith.constant 0 : index
    %c8 = arith.constant 8 : index
    %39 = vector.load %arg18[%c0_23, %c8] : memref<16x96xbf16, #tpu.memory_space<vmem>>, vector<16x8xbf16>
    %40 = vector.shape_cast %39 : vector<16x8xbf16> to vector<2x8x8xbf16>
    %c0_24 = arith.constant 0 : index
    %c40 = arith.constant 40 : index
    %41 = vector.load %arg18[%c0_24, %c40] : memref<16x96xbf16, #tpu.memory_space<vmem>>, vector<16x8xbf16>
    %42 = vector.shape_cast %41 : vector<16x8xbf16> to vector<2x8x8xbf16>
    %c0_25 = arith.constant 0 : index
    %c72 = arith.constant 72 : index
    %43 = vector.load %arg18[%c0_25, %c72] : memref<16x96xbf16, #tpu.memory_space<vmem>>, vector<16x8xbf16>
    %44 = vector.shape_cast %43 : vector<16x8xbf16> to vector<2x8x8xbf16>
    "tpu.trace_start"() <{level = 10 : i32, message = "bqd,bkd->bqk"}> : () -> ()
    %cst_26 = arith.constant dense<0.000000e+00> : vector<2x8x8xf32>
    %45 = tpu.matmul %40, %42, %cst_26 {dimension_numbers = #tpu.dot_dimension_numbers<[2], [2], [1], [1], [0, 0, 0, 1, 1, 1], [0], [0]>} : vector<2x8x8xbf16>, vector<2x8x8xbf16>, vector<2x8x8xf32> -> vector<2x8x8xf32>
    "tpu.trace_stop"() : () -> ()
    %46 = vector.broadcast %14 : vector<2x1x8xf32> to vector<2x8x8xf32>
    %47 = arith.addf %45, %46 : vector<2x8x8xf32>
    %cst_27 = arith.constant dense<0xFF800000> : vector<2x8xf32>
    %48 = vector.multi_reduction <maximumf>, %47, %cst_27 [2] : vector<2x8x8xf32> to vector<2x8xf32>
    %49 = vector.shape_cast %48 : vector<2x8xf32> to vector<2x8x1xf32>
    %50 = vector.broadcast %49 : vector<2x8x1xf32> to vector<2x8x8xf32>
    %51 = arith.subf %47, %50 : vector<2x8x8xf32>
    %52 = math.exp %51 : vector<2x8x8xf32>
    %cst_28 = arith.constant dense<0.000000e+00> : vector<2x8xf32>
    %53 = vector.multi_reduction <add>, %52, %cst_28 [2] : vector<2x8x8xf32> to vector<2x8xf32>
    %54 = vector.shape_cast %53 : vector<2x8xf32> to vector<2x8x1xf32>
    %55 = tpu.reciprocal %54 {approx = true} : vector<2x8x1xf32> -> vector<2x8x1xf32>
    %56 = vector.broadcast %55 : vector<2x8x1xf32> to vector<2x8x8xf32>
    %57 = arith.mulf %52, %56 : vector<2x8x8xf32>
    %58 = arith.truncf %57 : vector<2x8x8xf32> to vector<2x8x8xbf16>
    "tpu.trace_start"() <{level = 10 : i32, message = "bqk,bkd->bqd"}> : () -> ()
    %cst_29 = arith.constant dense<0.000000e+00> : vector<2x8x8xf32>
    %59 = tpu.matmul %58, %44, %cst_29 {dimension_numbers = #tpu.dot_dimension_numbers<[2], [1], [1], [2], [0, 0, 0, 1, 1, 2], [0], [0]>} : vector<2x8x8xbf16>, vector<2x8x8xbf16>, vector<2x8x8xf32> -> vector<2x8x8xf32>
    "tpu.trace_stop"() : () -> ()
    %60 = vector.shape_cast %59 : vector<2x8x8xf32> to vector<16x8xf32>
    %61 = arith.truncf %60 : vector<16x8xf32> to vector<16x8xbf16>
    %c0_30 = arith.constant 0 : index
    %c8_31 = arith.constant 8 : index
    %62 = vector.load %arg19[%c0_30, %c8_31] : memref<16x32xbf16, #tpu.memory_space<vmem>>, vector<16x8xbf16>
    tpu.vector_store %arg19[%c0_30, %c8_31], %61 {strides = array<i32>} : memref<16x32xbf16, #tpu.memory_space<vmem>>, vector<16x8xbf16>,
    %c0_32 = arith.constant 0 : index
    %c16 = arith.constant 16 : index
    %63 = vector.load %arg18[%c0_32, %c16] : memref<16x96xbf16, #tpu.memory_space<vmem>>, vector<16x8xbf16>
    %64 = vector.shape_cast %63 : vector<16x8xbf16> to vector<2x8x8xbf16>
    %c0_33 = arith.constant 0 : index
    %c48 = arith.constant 48 : index
    %65 = vector.load %arg18[%c0_33, %c48] : memref<16x96xbf16, #tpu.memory_space<vmem>>, vector<16x8xbf16>
    %66 = vector.shape_cast %65 : vector<16x8xbf16> to vector<2x8x8xbf16>
    %c0_34 = arith.constant 0 : index
    %c80 = arith.constant 80 : index
    %67 = vector.load %arg18[%c0_34, %c80] : memref<16x96xbf16, #tpu.memory_space<vmem>>, vector<16x8xbf16>
    %68 = vector.shape_cast %67 : vector<16x8xbf16> to vector<2x8x8xbf16>
    "tpu.trace_start"() <{level = 10 : i32, message = "bqd,bkd->bqk"}> : () -> ()
    %cst_35 = arith.constant dense<0.000000e+00> : vector<2x8x8xf32>
    %69 = tpu.matmul %64, %66, %cst_35 {dimension_numbers = #tpu.dot_dimension_numbers<[2], [2], [1], [1], [0, 0, 0, 1, 1, 1], [0], [0]>} : vector<2x8x8xbf16>, vector<2x8x8xbf16>, vector<2x8x8xf32> -> vector<2x8x8xf32>
    "tpu.trace_stop"() : () -> ()
    %70 = vector.broadcast %14 : vector<2x1x8xf32> to vector<2x8x8xf32>
    %71 = arith.addf %69, %70 : vector<2x8x8xf32>
    %cst_36 = arith.constant dense<0xFF800000> : vector<2x8xf32>
    %72 = vector.multi_reduction <maximumf>, %71, %cst_36 [2] : vector<2x8x8xf32> to vector<2x8xf32>
    %73 = vector.shape_cast %72 : vector<2x8xf32> to vector<2x8x1xf32>
    %74 = vector.broadcast %73 : vector<2x8x1xf32> to vector<2x8x8xf32>
    %75 = arith.subf %71, %74 : vector<2x8x8xf32>
    %76 = math.exp %75 : vector<2x8x8xf32>
    %cst_37 = arith.constant dense<0.000000e+00> : vector<2x8xf32>
    %77 = vector.multi_reduction <add>, %76, %cst_37 [2] : vector<2x8x8xf32> to vector<2x8xf32>
    %78 = vector.shape_cast %77 : vector<2x8xf32> to vector<2x8x1xf32>
    %79 = tpu.reciprocal %78 {approx = true} : vector<2x8x1xf32> -> vector<2x8x1xf32>
    %80 = vector.broadcast %79 : vector<2x8x1xf32> to vector<2x8x8xf32>
    %81 = arith.mulf %76, %80 : vector<2x8x8xf32>
    %82 = arith.truncf %81 : vector<2x8x8xf32> to vector<2x8x8xbf16>
    "tpu.trace_start"() <{level = 10 : i32, message = "bqk,bkd->bqd"}> : () -> ()
    %cst_38 = arith.constant dense<0.000000e+00> : vector<2x8x8xf32>
    %83 = tpu.matmul %82, %68, %cst_38 {dimension_numbers = #tpu.dot_dimension_numbers<[2], [1], [1], [2], [0, 0, 0, 1, 1, 2], [0], [0]>} : vector<2x8x8xbf16>, vector<2x8x8xbf16>, vector<2x8x8xf32> -> vector<2x8x8xf32>
    "tpu.trace_stop"() : () -> ()
    %84 = vector.shape_cast %83 : vector<2x8x8xf32> to vector<16x8xf32>
    %85 = arith.truncf %84 : vector<16x8xf32> to vector<16x8xbf16>
    %c0_39 = arith.constant 0 : index
    %c16_40 = arith.constant 16 : index
    %86 = vector.load %arg19[%c0_39, %c16_40] : memref<16x32xbf16, #tpu.memory_space<vmem>>, vector<16x8xbf16>
    tpu.vector_store %arg19[%c0_39, %c16_40], %85 {strides = array<i32>} : memref<16x32xbf16, #tpu.memory_space<vmem>>, vector<16x8xbf16>,
    %c0_41 = arith.constant 0 : index
    %c24 = arith.constant 24 : index
    %87 = vector.load %arg18[%c0_41, %c24] : memref<16x96xbf16, #tpu.memory_space<vmem>>, vector<16x8xbf16>
    %88 = vector.shape_cast %87 : vector<16x8xbf16> to vector<2x8x8xbf16>
    %c0_42 = arith.constant 0 : index
    %c56 = arith.constant 56 : index
    %89 = vector.load %arg18[%c0_42, %c56] : memref<16x96xbf16, #tpu.memory_space<vmem>>, vector<16x8xbf16>
    %90 = vector.shape_cast %89 : vector<16x8xbf16> to vector<2x8x8xbf16>
    %c0_43 = arith.constant 0 : index
    %c88 = arith.constant 88 : index
    %91 = vector.load %arg18[%c0_43, %c88] : memref<16x96xbf16, #tpu.memory_space<vmem>>, vector<16x8xbf16>
    %92 = vector.shape_cast %91 : vector<16x8xbf16> to vector<2x8x8xbf16>
    "tpu.trace_start"() <{level = 10 : i32, message = "bqd,bkd->bqk"}> : () -> ()
    %cst_44 = arith.constant dense<0.000000e+00> : vector<2x8x8xf32>
    %93 = tpu.matmul %88, %90, %cst_44 {dimension_numbers = #tpu.dot_dimension_numbers<[2], [2], [1], [1], [0, 0, 0, 1, 1, 1], [0], [0]>} : vector<2x8x8xbf16>, vector<2x8x8xbf16>, vector<2x8x8xf32> -> vector<2x8x8xf32>
    "tpu.trace_stop"() : () -> ()
    %94 = vector.broadcast %14 : vector<2x1x8xf32> to vector<2x8x8xf32>
    %95 = arith.addf %93, %94 : vector<2x8x8xf32>
    %cst_45 = arith.constant dense<0xFF800000> : vector<2x8xf32>
    %96 = vector.multi_reduction <maximumf>, %95, %cst_45 [2] : vector<2x8x8xf32> to vector<2x8xf32>
    %97 = vector.shape_cast %96 : vector<2x8xf32> to vector<2x8x1xf32>
    %98 = vector.broadcast %97 : vector<2x8x1xf32> to vector<2x8x8xf32>
    %99 = arith.subf %95, %98 : vector<2x8x8xf32>
    %100 = math.exp %99 : vector<2x8x8xf32>
    %cst_46 = arith.constant dense<0.000000e+00> : vector<2x8xf32>
    %101 = vector.multi_reduction <add>, %100, %cst_46 [2] : vector<2x8x8xf32> to vector<2x8xf32>
    %102 = vector.shape_cast %101 : vector<2x8xf32> to vector<2x8x1xf32>
    %103 = tpu.reciprocal %102 {approx = true} : vector<2x8x1xf32> -> vector<2x8x1xf32>
    %104 = vector.broadcast %103 : vector<2x8x1xf32> to vector<2x8x8xf32>
    %105 = arith.mulf %100, %104 : vector<2x8x8xf32>
    %106 = arith.truncf %105 : vector<2x8x8xf32> to vector<2x8x8xbf16>
    "tpu.trace_start"() <{level = 10 : i32, message = "bqk,bkd->bqd"}> : () -> ()
    %cst_47 = arith.constant dense<0.000000e+00> : vector<2x8x8xf32>
    %107 = tpu.matmul %106, %92, %cst_47 {dimension_numbers = #tpu.dot_dimension_numbers<[2], [1], [1], [2], [0, 0, 0, 1, 1, 2], [0], [0]>} : vector<2x8x8xbf16>, vector<2x8x8xbf16>, vector<2x8x8xf32> -> vector<2x8x8xf32>
    "tpu.trace_stop"() : () -> ()
    %108 = vector.shape_cast %107 : vector<2x8x8xf32> to vector<16x8xf32>
    %109 = arith.truncf %108 : vector<16x8xf32> to vector<16x8xbf16>
    %c0_48 = arith.constant 0 : index
    %c24_49 = arith.constant 24 : index
    %110 = vector.load %arg19[%c0_48, %c24_49] : memref<16x32xbf16, #tpu.memory_space<vmem>>, vector<16x8xbf16>
    tpu.vector_store %arg19[%c0_48, %c24_49], %109 {strides = array<i32>} : memref<16x32xbf16, #tpu.memory_space<vmem>>, vector<16x8xbf16>,
    %c0_50 = arith.constant 0 : index
    %c0_51 = arith.constant 0 : index
    %111 = vector.load %arg19[%c0_50, %c0_51] : memref<16x32xbf16, #tpu.memory_space<vmem>>, vector<16x32xbf16>
    %c0_52 = arith.constant 0 : index
    %c0_53 = arith.constant 0 : index
    %c0_54 = arith.constant 0 : index
    %112 = vector.load %arg6[%c0_52, %c0_53, %c0_54] : memref<1x32x32xbf16, #tpu.memory_space<vmem>>, vector<1x32x32xbf16>
    %113 = vector.shape_cast %112 : vector<1x32x32xbf16> to vector<32x32xbf16>
    %cst_55 = arith.constant dense<0.000000e+00> : vector<16x32xf32>
    %114 = tpu.matmul %111, %113, %cst_55 {dimension_numbers = #tpu.dot_dimension_numbers<[1], [0], [0], [1], [0, 0, 1, 1], [], []>} : vector<16x32xbf16>, vector<32x32xbf16>, vector<16x32xf32> -> vector<16x32xf32>
    %c0_56 = arith.constant 0 : index
    %c0_57 = arith.constant 0 : index
    %c0_58 = arith.constant 0 : index
    %115 = vector.load %arg7[%c0_56, %c0_57, %c0_58] : memref<1x1x32xf32, #tpu.memory_space<vmem>>, vector<1x1x32xf32>
    %116 = vector.shape_cast %115 : vector<1x1x32xf32> to vector<1x32xf32>
    %117 = vector.broadcast %116 : vector<1x32xf32> to vector<16x32xf32>
    %118 = arith.addf %114, %117 : vector<16x32xf32>
    %119 = arith.addf %3, %118 : vector<16x32xf32>
    %c0_59 = arith.constant 0 : index
    %c0_60 = arith.constant 0 : index
    %c0_61 = arith.constant 0 : index
    %120 = vector.load %arg12[%c0_59, %c0_60, %c0_61] : memref<1x1x32xf32, #tpu.memory_space<vmem>>, vector<1x1x32xf32>
    %121 = vector.shape_cast %120 : vector<1x1x32xf32> to vector<1x32xf32>
    %c0_62 = arith.constant 0 : index
    %c0_63 = arith.constant 0 : index
    %c0_64 = arith.constant 0 : index
    %122 = vector.load %arg13[%c0_62, %c0_63, %c0_64] : memref<1x1x32xf32, #tpu.memory_space<vmem>>, vector<1x1x32xf32>
    %123 = vector.shape_cast %122 : vector<1x1x32xf32> to vector<1x32xf32>
    %cst_65 = arith.constant dense<0.000000e+00> : vector<16xf32>
    %124 = vector.multi_reduction <add>, %119, %cst_65 [1] : vector<16x32xf32> to vector<16xf32>
    %125 = vector.shape_cast %124 : vector<16xf32> to vector<16x1xf32>
    %cst_66 = arith.constant 3.200000e+01 : f32
    %126 = vector.broadcast %cst_66 : f32 to vector<16x1xf32>
    %127 = arith.divf %125, %126 : vector<16x1xf32>
    %128 = vector.broadcast %127 : vector<16x1xf32> to vector<16x32xf32>
    %129 = arith.subf %119, %128 : vector<16x32xf32>
    %130 = arith.mulf %129, %129 : vector<16x32xf32>
    %cst_67 = arith.constant dense<0.000000e+00> : vector<16xf32>
    %131 = vector.multi_reduction <add>, %130, %cst_67 [1] : vector<16x32xf32> to vector<16xf32>
    %132 = vector.shape_cast %131 : vector<16xf32> to vector<16x1xf32>
    %cst_68 = arith.constant 3.200000e+01 : f32
    %133 = vector.broadcast %cst_68 : f32 to vector<16x1xf32>
    %134 = arith.divf %132, %133 : vector<16x1xf32>
    %135 = vector.broadcast %127 : vector<16x1xf32> to vector<16x32xf32>
    %136 = arith.subf %119, %135 : vector<16x32xf32>
    %cst_69 = arith.constant 9.99999997E-7 : f32
    %137 = vector.broadcast %cst_69 : f32 to vector<16x1xf32>
    %138 = arith.addf %134, %137 : vector<16x1xf32>
    %139 = math.rsqrt %138 : vector<16x1xf32>
    %140 = vector.broadcast %139 : vector<16x1xf32> to vector<16x32xf32>
    %141 = arith.mulf %136, %140 : vector<16x32xf32>
    %142 = vector.broadcast %121 : vector<1x32xf32> to vector<16x32xf32>
    %143 = arith.mulf %141, %142 : vector<16x32xf32>
    %144 = vector.broadcast %123 : vector<1x32xf32> to vector<16x32xf32>
    %145 = arith.addf %143, %144 : vector<16x32xf32>
    %146 = arith.truncf %145 : vector<16x32xf32> to vector<16x32xbf16>
    %c0_70 = arith.constant 0 : index
    %c0_71 = arith.constant 0 : index
    %c0_72 = arith.constant 0 : index
    %147 = vector.load %arg9[%c0_70, %c0_71, %c0_72] : memref<1x1x128xf32, #tpu.memory_space<vmem>>, vector<1x1x128xf32>
    %148 = vector.shape_cast %147 : vector<1x1x128xf32> to vector<1x128xf32>
    %c0_73 = arith.constant 0 : index
    %c0_74 = arith.constant 0 : index
    %c0_75 = arith.constant 0 : index
    %149 = vector.load %arg8[%c0_73, %c0_74, %c0_75] : memref<1x32x128xbf16, #tpu.memory_space<vmem>>, vector<1x32x128xbf16>
    %150 = vector.shape_cast %149 : vector<1x32x128xbf16> to vector<32x128xbf16>
    %cst_76 = arith.constant dense<0.000000e+00> : vector<16x128xf32>
    %151 = tpu.matmul %146, %150, %cst_76 {dimension_numbers = #tpu.dot_dimension_numbers<[1], [0], [0], [1], [0, 0, 1, 1], [], []>} : vector<16x32xbf16>, vector<32x128xbf16>, vector<16x128xf32> -> vector<16x128xf32>
    %152 = vector.broadcast %148 : vector<1x128xf32> to vector<16x128xf32>
    %153 = arith.addf %151, %152 : vector<16x128xf32>
    %cst_77 = arith.constant 0.000000e+00 : f32
    %154 = vector.broadcast %cst_77 : f32 to vector<16x128xf32>
    %155 = arith.maximumf %153, %154 : vector<16x128xf32>
    %156 = arith.truncf %155 : vector<16x128xf32> to vector<16x128xbf16>
    %c0_78 = arith.constant 0 : index
    %c0_79 = arith.constant 0 : index
    %c0_80 = arith.constant 0 : index
    %157 = vector.load %arg10[%c0_78, %c0_79, %c0_80] : memref<1x128x32xbf16, #tpu.memory_space<vmem>>, vector<1x128x32xbf16>
    %158 = vector.shape_cast %157 : vector<1x128x32xbf16> to vector<128x32xbf16>
    %cst_81 = arith.constant dense<0.000000e+00> : vector<16x32xf32>
    %159 = tpu.matmul %156, %158, %cst_81 {dimension_numbers = #tpu.dot_dimension_numbers<[1], [0], [0], [1], [0, 0, 1, 1], [], []>} : vector<16x128xbf16>, vector<128x32xbf16>, vector<16x32xf32> -> vector<16x32xf32>
    %c0_82 = arith.constant 0 : index
    %c0_83 = arith.constant 0 : index
    %c0_84 = arith.constant 0 : index
    %160 = vector.load %arg11[%c0_82, %c0_83, %c0_84] : memref<1x1x32xf32, #tpu.memory_space<vmem>>, vector<1x1x32xf32>
    %161 = vector.shape_cast %160 : vector<1x1x32xf32> to vector<1x32xf32>
    %162 = vector.broadcast %161 : vector<1x32xf32> to vector<16x32xf32>
    %163 = arith.addf %159, %162 : vector<16x32xf32>
    %164 = arith.addf %145, %163 : vector<16x32xf32>
    %c0_85 = arith.constant 0 : index
    %c0_86 = arith.constant 0 : index
    %c0_87 = arith.constant 0 : index
    %165 = vector.load %arg14[%c0_85, %c0_86, %c0_87] : memref<1x1x32xf32, #tpu.memory_space<vmem>>, vector<1x1x32xf32>
    %166 = vector.shape_cast %165 : vector<1x1x32xf32> to vector<1x32xf32>
    %c0_88 = arith.constant 0 : index
    %c0_89 = arith.constant 0 : index
    %c0_90 = arith.constant 0 : index
    %167 = vector.load %arg15[%c0_88, %c0_89, %c0_90] : memref<1x1x32xf32, #tpu.memory_space<vmem>>, vector<1x1x32xf32>
    %168 = vector.shape_cast %167 : vector<1x1x32xf32> to vector<1x32xf32>
    %cst_91 = arith.constant dense<0.000000e+00> : vector<16xf32>
    %169 = vector.multi_reduction <add>, %164, %cst_91 [1] : vector<16x32xf32> to vector<16xf32>
    %170 = vector.shape_cast %169 : vector<16xf32> to vector<16x1xf32>
    %cst_92 = arith.constant 3.200000e+01 : f32
    %171 = vector.broadcast %cst_92 : f32 to vector<16x1xf32>
    %172 = arith.divf %170, %171 : vector<16x1xf32>
    %173 = vector.broadcast %172 : vector<16x1xf32> to vector<16x32xf32>
    %174 = arith.subf %164, %173 : vector<16x32xf32>
    %175 = arith.mulf %174, %174 : vector<16x32xf32>
    %cst_93 = arith.constant dense<0.000000e+00> : vector<16xf32>
    %176 = vector.multi_reduction <add>, %175, %cst_93 [1] : vector<16x32xf32> to vector<16xf32>
    %177 = vector.shape_cast %176 : vector<16xf32> to vector<16x1xf32>
    %cst_94 = arith.constant 3.200000e+01 : f32
    %178 = vector.broadcast %cst_94 : f32 to vector<16x1xf32>
    %179 = arith.divf %177, %178 : vector<16x1xf32>
    %180 = vector.broadcast %172 : vector<16x1xf32> to vector<16x32xf32>
    %181 = arith.subf %164, %180 : vector<16x32xf32>
    %cst_95 = arith.constant 9.99999997E-7 : f32
    %182 = vector.broadcast %cst_95 : f32 to vector<16x1xf32>
    %183 = arith.addf %179, %182 : vector<16x1xf32>
    %184 = math.rsqrt %183 : vector<16x1xf32>
    %185 = vector.broadcast %184 : vector<16x1xf32> to vector<16x32xf32>
    %186 = arith.mulf %181, %185 : vector<16x32xf32>
    %187 = vector.broadcast %166 : vector<1x32xf32> to vector<16x32xf32>
    %188 = arith.mulf %186, %187 : vector<16x32xf32>
    %189 = vector.broadcast %168 : vector<1x32xf32> to vector<16x32xf32>
    %190 = arith.addf %188, %189 : vector<16x32xf32>
    %c1_i32 = arith.constant 1 : i32
    %191 = arith.cmpi slt, %arg1, %c1_i32 : i32
    %192 = arith.extui %191 : i1 to i32
    %c0_i32_96 = arith.constant 0 : i32
    %193 = arith.cmpi ne, %192, %c0_i32_96 : i32
    scf.if %193 {
      %c0_99 = arith.constant 0 : index
      %c0_100 = arith.constant 0 : index
      %197 = vector.load %arg17[%c0_99, %c0_100] : memref<16x32xf32, #tpu.memory_space<vmem>>, vector<16x32xf32>
      tpu.vector_store %arg17[%c0_99, %c0_100], %190 {strides = array<i32>} : memref<16x32xf32, #tpu.memory_space<vmem>>, vector<16x32xf32>,
    } else {
    }
    %c1_i32_97 = arith.constant 1 : i32
    %194 = arith.cmpi eq, %arg1, %c1_i32_97 : i32
    %195 = arith.extui %194 : i1 to i32
    %c0_i32_98 = arith.constant 0 : i32
    %196 = arith.cmpi ne, %195, %c0_i32_98 : i32
    scf.if %196 {
      %197 = vector.shape_cast %190 : vector<16x32xf32> to vector<2x8x32xf32>
      %c0_99 = arith.constant 0 : index
      %c0_100 = arith.constant 0 : index
      %c0_101 = arith.constant 0 : index
      %198 = vector.load %arg16[%c0_99, %c0_100, %c0_101] : memref<2x8x32xf32, #tpu.memory_space<vmem>>, vector<2x8x32xf32>
      tpu.vector_store %arg16[%c0_99, %c0_100, %c0_101], %197 {strides = array<i32>} : memref<2x8x32xf32, #tpu.memory_space<vmem>>, vector<2x8x32xf32>,
    } else {
    }
    return
  }
  func.func @transform_0(%arg0: i32, %arg1: i32) -> (i32, i32, i32) {
    %c0_i32 = arith.constant 0 : i32
    %c0_i32_0 = arith.constant 0 : i32
    %c0_i32_1 = arith.constant 0 : i32
    return %arg0, %c0_i32, %c0_i32_0 : i32, i32, i32
  }
  func.func @transform_1(%arg0: i32, %arg1: i32) -> (i32, i32, i32) {
    %c0_i32 = arith.constant 0 : i32
    %c0_i32_0 = arith.constant 0 : i32
    %c0_i32_1 = arith.constant 0 : i32
    return %arg0, %c0_i32, %c0_i32_0 : i32, i32, i32
  }
  func.func @transform_2(%arg0: i32, %arg1: i32) -> (i32, i32, i32) {
    %c0_i32 = arith.constant 0 : i32
    %c0_i32_0 = arith.constant 0 : i32
    %c0_i32_1 = arith.constant 0 : i32
    return %arg1, %c0_i32, %c0_i32_0 : i32, i32, i32
  }
  func.func @transform_3(%arg0: i32, %arg1: i32) -> (i32, i32, i32) {
    %c0_i32 = arith.constant 0 : i32
    %c0_i32_0 = arith.constant 0 : i32
    %c0_i32_1 = arith.constant 0 : i32
    return %arg1, %c0_i32, %c0_i32_0 : i32, i32, i32
  }
  func.func @transform_4(%arg0: i32, %arg1: i32) -> (i32, i32, i32) {
    %c0_i32 = arith.constant 0 : i32
    %c0_i32_0 = arith.constant 0 : i32
    %c0_i32_1 = arith.constant 0 : i32
    return %arg1, %c0_i32, %c0_i32_0 : i32, i32, i32
  }
  func.func @transform_5(%arg0: i32, %arg1: i32) -> (i32, i32, i32) {
    %c0_i32 = arith.constant 0 : i32
    %c0_i32_0 = arith.constant 0 : i32
    %c0_i32_1 = arith.constant 0 : i32
    return %arg1, %c0_i32, %c0_i32_0 : i32, i32, i32
  }
  func.func @transform_6(%arg0: i32, %arg1: i32) -> (i32, i32, i32) {
    %c0_i32 = arith.constant 0 : i32
    %c0_i32_0 = arith.constant 0 : i32
    %c0_i32_1 = arith.constant 0 : i32
    return %arg1, %c0_i32, %c0_i32_0 : i32, i32, i32
  }
  func.func @transform_7(%arg0: i32, %arg1: i32) -> (i32, i32, i32) {
    %c0_i32 = arith.constant 0 : i32
    %c0_i32_0 = arith.constant 0 : i32
    %c0_i32_1 = arith.constant 0 : i32
    return %arg1, %c0_i32, %c0_i32_0 : i32, i32, i32
  }
  func.func @transform_8(%arg0: i32, %arg1: i32) -> (i32, i32, i32) {
    %c0_i32 = arith.constant 0 : i32
    %c0_i32_0 = arith.constant 0 : i32
    %c0_i32_1 = arith.constant 0 : i32
    return %arg1, %c0_i32, %c0_i32_0 : i32, i32, i32
  }
  func.func @transform_9(%arg0: i32, %arg1: i32) -> (i32, i32, i32) {
    %c0_i32 = arith.constant 0 : i32
    %c0_i32_0 = arith.constant 0 : i32
    %c0_i32_1 = arith.constant 0 : i32
    return %arg1, %c0_i32, %c0_i32_0 : i32, i32, i32
  }
  func.func @transform_10(%arg0: i32, %arg1: i32) -> (i32, i32, i32) {
    %c0_i32 = arith.constant 0 : i32
    %c0_i32_0 = arith.constant 0 : i32
    %c0_i32_1 = arith.constant 0 : i32
    return %arg1, %c0_i32, %c0_i32_0 : i32, i32, i32
  }
  func.func @transform_11(%arg0: i32, %arg1: i32) -> (i32, i32, i32) {
    %c0_i32 = arith.constant 0 : i32
    %c0_i32_0 = arith.constant 0 : i32
    %c0_i32_1 = arith.constant 0 : i32
    return %arg1, %c0_i32, %c0_i32_0 : i32, i32, i32
  }
  func.func @transform_12(%arg0: i32, %arg1: i32) -> (i32, i32, i32) {
    %c0_i32 = arith.constant 0 : i32
    %c0_i32_0 = arith.constant 0 : i32
    %c0_i32_1 = arith.constant 0 : i32
    return %arg1, %c0_i32, %c0_i32_0 : i32, i32, i32
  }
  func.func @transform_13(%arg0: i32, %arg1: i32) -> (i32, i32, i32) {
    %c0_i32 = arith.constant 0 : i32
    %c0_i32_0 = arith.constant 0 : i32
    %c0_i32_1 = arith.constant 0 : i32
    return %arg1, %c0_i32, %c0_i32_0 : i32, i32, i32
  }
  func.func @transform_14(%arg0: i32, %arg1: i32) -> (i32, i32, i32) {
    %c0_i32 = arith.constant 0 : i32
    %c0_i32_0 = arith.constant 0 : i32
    %c0_i32_1 = arith.constant 0 : i32
    return %arg0, %c0_i32, %c0_i32_0 : i32, i32, i32
  }
}

</mosaic_0001>

<llo_original>
// kernel: _encoder_apply.1
$region0: #{_encoder_apply.1}
  #allocation0 [shape = 'u32[]', space=smem, size = 0x4, offset = 0x4, fixed_abs, tag = 'smem constant byte address 0x4 - core index']
  #allocation1 [shape = 'u32[144,128]{1,0:T(1,128)}', space=vmem, size = 0x12000, scoped, tag = 'internal scratch']
  #allocation2 [shape = 'f32[16,32]{1,0:T(8,128)}', space=vmem, size = 0x2000, scoped, tag = 'scratch operand']
  #allocation3 [shape = 'bf16[16,96]{1,0:T(16,128)(2,1)}', space=vmem, size = 0x1000, scoped, tag = 'scratch operand']
  #allocation4 [shape = 'bf16[16,32]{1,0:T(16,128)(2,1)}', space=vmem, size = 0x1000, scoped, tag = 'scratch operand']
  %s0 = inlined_call_operand.vmem [shape: f32[2,8,32], index: 0, kind: input, shape index: {}]
  %s1 = inlined_call_operand.vmem [shape: f32[2,1,8], index: 1, kind: input, shape index: {}]
  %s2 = inlined_call_operand.vmem [shape: bf16[2,32,96], index: 2, kind: input, shape index: {}]
  %s3 = inlined_call_operand.vmem [shape: f32[2,1,96], index: 3, kind: input, shape index: {}]
  %s4 = inlined_call_operand.vmem [shape: bf16[2,32,32], index: 4, kind: input, shape index: {}]
  %s5 = inlined_call_operand.vmem [shape: f32[2,1,32], index: 5, kind: input, shape index: {}]
  %s6 = inlined_call_operand.vmem [shape: bf16[2,32,128], index: 6, kind: input, shape index: {}]
  %s7 = inlined_call_operand.vmem [shape: f32[2,1,128], index: 7, kind: input, shape index: {}]
  %s8 = inlined_call_operand.vmem [shape: bf16[2,128,32], index: 8, kind: input, shape index: {}]
  %s9 = inlined_call_operand.vmem [shape: f32[2,1,32], index: 9, kind: input, shape index: {}]
  %s10 = inlined_call_operand.vmem [shape: f32[2,1,32], index: 10, kind: input, shape index: {}]
  %s11 = inlined_call_operand.vmem [shape: f32[2,1,32], index: 11, kind: input, shape index: {}]
  %s12 = inlined_call_operand.vmem [shape: f32[2,1,32], index: 12, kind: input, shape index: {}]
  %s13 = inlined_call_operand.vmem [shape: f32[2,1,32], index: 13, kind: input, shape index: {}]
  %s14 = inlined_call_operand.hbm [shape: f32[2,8,32], index: 14, kind: output, shape index: {}]
  %s15 = sld [smem:[#allocation0]]
  $region101: #{_encoder_apply.1} parent=0
    _
  %s17 = ssub.s32 1, %s15
  %s18 = scalar_select 0, %s17, %s15
  $region1: #{_encoder_apply.1} parent=0
    #allocation5 [shape = 'u8[8192]{0}', space=vmem, size = 0x2000, scoped, tag = 'output window, operand 0, single buffered']
    #allocation6 [shape = 's32[2]{0}', space=sflag, size = 0x8, scoped, tag = 'scoped memory for _encoder_apply.1']
    %19 = vsyncpa [#allocation6], 0
    loop: start=0, step=1, limit=4
    $region2: #{_encoder_apply.1} parent=1 // loop_pre_header
      _
    $region3: #{_encoder_apply.1} parent=1 // loop_header
      %s21 = sphi 0, %s25
      %p22 = scmp.ge.s32.totalorder %s21, 4
      %s28 = sphi 0, %s40
      %s29 = sphi 0, %s36
      %s30 = sphi 0, %s28
      %s31 = sphi 0, %s29
      %s32 = sphi 0, %s30
      %s33 = sphi 0, %s31
      %s43 = sphi 0, %s45
      %s46 = sphi 0, %s43
      %s47 = sphi 0, %s46
      %s63 = sphi 0, %s47
      %s69 = sphi 0, %s71
      %s72 = sphi 0, %s69
      %s73 = sphi 0, %s72
      %s89 = sphi 0, %s73
      %s95 = sphi 0, %s97
      %s98 = sphi 0, %s95
      %s99 = sphi 0, %s98
      %s115 = sphi 0, %s99
      %s121 = sphi 0, %s123
      %s124 = sphi 0, %s121
      %s125 = sphi 0, %s124
      %s141 = sphi 0, %s125
      %s147 = sphi 0, %s149
      %s150 = sphi 0, %s147
      %s151 = sphi 0, %s150
      %s167 = sphi 0, %s151
      %s173 = sphi 0, %s175
      %s176 = sphi 0, %s173
      %s177 = sphi 0, %s176
      %s193 = sphi 0, %s177
      %s199 = sphi 0, %s201
      %s202 = sphi 0, %s199
      %s203 = sphi 0, %s202
      %s219 = sphi 0, %s203
      %s225 = sphi 0, %s227
      %s228 = sphi 0, %s225
      %s229 = sphi 0, %s228
      %s245 = sphi 0, %s229
      %s251 = sphi 0, %s253
      %s254 = sphi 0, %s251
      %s255 = sphi 0, %s254
      %s271 = sphi 0, %s255
      %s277 = sphi 0, %s279
      %s280 = sphi 0, %s277
      %s281 = sphi 0, %s280
      %s297 = sphi 0, %s281
      %s303 = sphi 0, %s305
      %s306 = sphi 0, %s303
      %s307 = sphi 0, %s306
      %s323 = sphi 0, %s307
      %s329 = sphi 0, %s331
      %s332 = sphi 0, %s329
      %s333 = sphi 0, %s332
      %s349 = sphi 0, %s333
      %s355 = sphi 0, %s357
      %s358 = sphi 0, %s355
      %s359 = sphi 0, %s358
      %s375 = sphi 0, %s359
      %s381 = sphi 0, %s383
      %s384 = sphi 0, %s381
      %s385 = sphi 0, %s384
      %s401 = sphi 0, %s385
      %s407 = sphi 0, %s409
      %s410 = sphi 0, %s407
      %s411 = sphi 0, %s410
      %s427 = sphi 0, %s411
    $region4: #{_encoder_apply.1} parent=1 // loop_header_branch
      %24 = sbr.rel (%p22) target = $region8
    $region5: #{_encoder_apply.1} parent=1 // loop_body
      %s26 = ssub.s32 %s21, 1
      %s27 = ssub.s32 %s21, 2
      %s34 = sadd.s32 1, %s29
      %p35 = scmp.ge.s32.totalorder %s34, 2
      %s36 = scalar_select %p35, 0, %s34
      %s37 = sadd.s32 1, %s28
      %s38 = scalar_select %p35, %s37, %s28
      %p39 = scmp.ge.s32.totalorder %s38, 1
      %s40 = scalar_select %p39, 0, %s38
      %s41 = ssub.s32 %s28, %s40
      %p42 = scmp.eq.s32.totalorder %s41, 0
      %s44 = sadd.s32 %s43, 1
      %s45 = scalar_select %p42, %s43, %s44
      %p48 = pneg %p42
      %p49 = scmp.eq.s32.totalorder %s21, 1
      %p50 = por %p48, %p49
      %p51 = scmp.ne.s32.totalorder %s43, %s46
      %p52 = scmp.eq.s32.totalorder %s21, 0
      %p53 = por %p51, %p52
      %p54 = scmp.ne.s32.totalorder %s43, %s46
      %p55 = scmp.eq.s32.totalorder %s26, 1
      %p56 = por %p54, %p55
      %p57 = scmp.ne.s32.totalorder %s46, %s47
      %p58 = scmp.eq.s32.totalorder %s26, 0
      %p59 = por %p57, %p58
      %p60 = scmp.ne.s32.totalorder %s46, %s47
      %p61 = scmp.eq.s32.totalorder %s27, 1
      %p62 = por %p60, %p61
      %p64 = scmp.ne.s32.totalorder %s47, %s63
      %p65 = scmp.eq.s32.totalorder %s27, 0
      %p66 = por %p64, %p65
      %s67 = ssub.s32 %s28, %s40
      %p68 = scmp.eq.s32.totalorder %s67, 0
      %s70 = sadd.s32 %s69, 1
      %s71 = scalar_select %p68, %s69, %s70
      %p74 = pneg %p68
      %p75 = scmp.eq.s32.totalorder %s21, 1
      %p76 = por %p74, %p75
      %p77 = scmp.ne.s32.totalorder %s69, %s72
      %p78 = scmp.eq.s32.totalorder %s21, 0
      %p79 = por %p77, %p78
      %p80 = scmp.ne.s32.totalorder %s69, %s72
      %p81 = scmp.eq.s32.totalorder %s26, 1
      %p82 = por %p80, %p81
      %p83 = scmp.ne.s32.totalorder %s72, %s73
      %p84 = scmp.eq.s32.totalorder %s26, 0
      %p85 = por %p83, %p84
      %p86 = scmp.ne.s32.totalorder %s72, %s73
      %p87 = scmp.eq.s32.totalorder %s27, 1
      %p88 = por %p86, %p87
      %p90 = scmp.ne.s32.totalorder %s73, %s89
      %p91 = scmp.eq.s32.totalorder %s27, 0
      %p92 = por %p90, %p91
      %s93 = ssub.s32 %s29, %s36
      %p94 = scmp.eq.s32.totalorder %s93, 0
      %s96 = sadd.s32 %s95, 1
      %s97 = scalar_select %p94, %s95, %s96
      %p100 = pneg %p94
      %p101 = scmp.eq.s32.totalorder %s21, 1
      %p102 = por %p100, %p101
      %p103 = scmp.ne.s32.totalorder %s95, %s98
      %p104 = scmp.eq.s32.totalorder %s21, 0
      %p105 = por %p103, %p104
      %p106 = scmp.ne.s32.totalorder %s95, %s98
      %p107 = scmp.eq.s32.totalorder %s26, 1
      %p108 = por %p106, %p107
      %p109 = scmp.ne.s32.totalorder %s98, %s99
      %p110 = scmp.eq.s32.totalorder %s26, 0
      %p111 = por %p109, %p110
      %p112 = scmp.ne.s32.totalorder %s98, %s99
      %p113 = scmp.eq.s32.totalorder %s27, 1
      %p114 = por %p112, %p113
      %p116 = scmp.ne.s32.totalorder %s99, %s115
      %p117 = scmp.eq.s32.totalorder %s27, 0
      %p118 = por %p116, %p117
      %s119 = ssub.s32 %s29, %s36
      %p120 = scmp.eq.s32.totalorder %s119, 0
      %s122 = sadd.s32 %s121, 1
      %s123 = scalar_select %p120, %s121, %s122
      %p126 = pneg %p120
      %p127 = scmp.eq.s32.totalorder %s21, 1
      %p128 = por %p126, %p127
      %p129 = scmp.ne.s32.totalorder %s121, %s124
      %p130 = scmp.eq.s32.totalorder %s21, 0
      %p131 = por %p129, %p130
      %p132 = scmp.ne.s32.totalorder %s121, %s124
      %p133 = scmp.eq.s32.totalorder %s26, 1
      %p134 = por %p132, %p133
      %p135 = scmp.ne.s32.totalorder %s124, %s125
      %p136 = scmp.eq.s32.totalorder %s26, 0
      %p137 = por %p135, %p136
      %p138 = scmp.ne.s32.totalorder %s124, %s125
      %p139 = scmp.eq.s32.totalorder %s27, 1
      %p140 = por %p138, %p139
      %p142 = scmp.ne.s32.totalorder %s125, %s141
      %p143 = scmp.eq.s32.totalorder %s27, 0
      %p144 = por %p142, %p143
      %s145 = ssub.s32 %s29, %s36
      %p146 = scmp.eq.s32.totalorder %s145, 0
      %s148 = sadd.s32 %s147, 1
      %s149 = scalar_select %p146, %s147, %s148
      %p152 = pneg %p146
      %p153 = scmp.eq.s32.totalorder %s21, 1
      %p154 = por %p152, %p153
      %p155 = scmp.ne.s32.totalorder %s147, %s150
      %p156 = scmp.eq.s32.totalorder %s21, 0
      %p157 = por %p155, %p156
      %p158 = scmp.ne.s32.totalorder %s147, %s150
      %p159 = scmp.eq.s32.totalorder %s26, 1
      %p160 = por %p158, %p159
      %p161 = scmp.ne.s32.totalorder %s150, %s151
      %p162 = scmp.eq.s32.totalorder %s26, 0
      %p163 = por %p161, %p162
      %p164 = scmp.ne.s32.totalorder %s150, %s151
      %p165 = scmp.eq.s32.totalorder %s27, 1
      %p166 = por %p164, %p165
      %p168 = scmp.ne.s32.totalorder %s151, %s167
      %p169 = scmp.eq.s32.totalorder %s27, 0
      %p170 = por %p168, %p169
      %s171 = ssub.s32 %s29, %s36
      %p172 = scmp.eq.s32.totalorder %s171, 0
      %s174 = sadd.s32 %s173, 1
      %s175 = scalar_select %p172, %s173, %s174
      %p178 = pneg %p172
      %p179 = scmp.eq.s32.totalorder %s21, 1
      %p180 = por %p178, %p179
      %p181 = scmp.ne.s32.totalorder %s173, %s176
      %p182 = scmp.eq.s32.totalorder %s21, 0
      %p183 = por %p181, %p182
      %p184 = scmp.ne.s32.totalorder %s173, %s176
      %p185 = scmp.eq.s32.totalorder %s26, 1
      %p186 = por %p184, %p185
      %p187 = scmp.ne.s32.totalorder %s176, %s177
      %p188 = scmp.eq.s32.totalorder %s26, 0
      %p189 = por %p187, %p188
      %p190 = scmp.ne.s32.totalorder %s176, %s177
      %p191 = scmp.eq.s32.totalorder %s27, 1
      %p192 = por %p190, %p191
      %p194 = scmp.ne.s32.totalorder %s177, %s193
      %p195 = scmp.eq.s32.totalorder %s27, 0
      %p196 = por %p194, %p195
      %s197 = ssub.s32 %s29, %s36
      %p198 = scmp.eq.s32.totalorder %s197, 0
      %s200 = sadd.s32 %s199, 1
      %s201 = scalar_select %p198, %s199, %s200
      %p204 = pneg %p198
      %p205 = scmp.eq.s32.totalorder %s21, 1
      %p206 = por %p204, %p205
      %p207 = scmp.ne.s32.totalorder %s199, %s202
      %p208 = scmp.eq.s32.totalorder %s21, 0
      %p209 = por %p207, %p208
      %p210 = scmp.ne.s32.totalorder %s199, %s202
      %p211 = scmp.eq.s32.totalorder %s26, 1
      %p212 = por %p210, %p211
      %p213 = scmp.ne.s32.totalorder %s202, %s203
      %p214 = scmp.eq.s32.totalorder %s26, 0
      %p215 = por %p213, %p214
      %p216 = scmp.ne.s32.totalorder %s202, %s203
      %p217 = scmp.eq.s32.totalorder %s27, 1
      %p218 = por %p216, %p217
      %p220 = scmp.ne.s32.totalorder %s203, %s219
      %p221 = scmp.eq.s32.totalorder %s27, 0
      %p222 = por %p220, %p221
      %s223 = ssub.s32 %s29, %s36
      %p224 = scmp.eq.s32.totalorder %s223, 0
      %s226 = sadd.s32 %s225, 1
      %s227 = scalar_select %p224, %s225, %s226
      %p230 = pneg %p224
      %p231 = scmp.eq.s32.totalorder %s21, 1
      %p232 = por %p230, %p231
      %p233 = scmp.ne.s32.totalorder %s225, %s228
      %p234 = scmp.eq.s32.totalorder %s21, 0
      %p235 = por %p233, %p234
      %p236 = scmp.ne.s32.totalorder %s225, %s228
      %p237 = scmp.eq.s32.totalorder %s26, 1
      %p238 = por %p236, %p237
      %p239 = scmp.ne.s32.totalorder %s228, %s229
      %p240 = scmp.eq.s32.totalorder %s26, 0
      %p241 = por %p239, %p240
      %p242 = scmp.ne.s32.totalorder %s228, %s229
      %p243 = scmp.eq.s32.totalorder %s27, 1
      %p244 = por %p242, %p243
      %p246 = scmp.ne.s32.totalorder %s229, %s245
      %p247 = scmp.eq.s32.totalorder %s27, 0
      %p248 = por %p246, %p247
      %s249 = ssub.s32 %s29, %s36
      %p250 = scmp.eq.s32.totalorder %s249, 0
      %s252 = sadd.s32 %s251, 1
      %s253 = scalar_select %p250, %s251, %s252
      %p256 = pneg %p250
      %p257 = scmp.eq.s32.totalorder %s21, 1
      %p258 = por %p256, %p257
      %p259 = scmp.ne.s32.totalorder %s251, %s254
      %p260 = scmp.eq.s32.totalorder %s21, 0
      %p261 = por %p259, %p260
      %p262 = scmp.ne.s32.totalorder %s251, %s254
      %p263 = scmp.eq.s32.totalorder %s26, 1
      %p264 = por %p262, %p263
      %p265 = scmp.ne.s32.totalorder %s254, %s255
      %p266 = scmp.eq.s32.totalorder %s26, 0
      %p267 = por %p265, %p266
      %p268 = scmp.ne.s32.totalorder %s254, %s255
      %p269 = scmp.eq.s32.totalorder %s27, 1
      %p270 = por %p268, %p269
      %p272 = scmp.ne.s32.totalorder %s255, %s271
      %p273 = scmp.eq.s32.totalorder %s27, 0
      %p274 = por %p272, %p273
      %s275 = ssub.s32 %s29, %s36
      %p276 = scmp.eq.s32.totalorder %s275, 0
      %s278 = sadd.s32 %s277, 1
      %s279 = scalar_select %p276, %s277, %s278
      %p282 = pneg %p276
      %p283 = scmp.eq.s32.totalorder %s21, 1
      %p284 = por %p282, %p283
      %p285 = scmp.ne.s32.totalorder %s277, %s280
      %p286 = scmp.eq.s32.totalorder %s21, 0
      %p287 = por %p285, %p286
      %p288 = scmp.ne.s32.totalorder %s277, %s280
      %p289 = scmp.eq.s32.totalorder %s26, 1
      %p290 = por %p288, %p289
      %p291 = scmp.ne.s32.totalorder %s280, %s281
      %p292 = scmp.eq.s32.totalorder %s26, 0
      %p293 = por %p291, %p292
      %p294 = scmp.ne.s32.totalorder %s280, %s281
      %p295 = scmp.eq.s32.totalorder %s27, 1
      %p296 = por %p294, %p295
      %p298 = scmp.ne.s32.totalorder %s281, %s297
      %p299 = scmp.eq.s32.totalorder %s27, 0
      %p300 = por %p298, %p299
      %s301 = ssub.s32 %s29, %s36
      %p302 = scmp.eq.s32.totalorder %s301, 0
      %s304 = sadd.s32 %s303, 1
      %s305 = scalar_select %p302, %s303, %s304
      %p308 = pneg %p302
      %p309 = scmp.eq.s32.totalorder %s21, 1
      %p310 = por %p308, %p309
      %p311 = scmp.ne.s32.totalorder %s303, %s306
      %p312 = scmp.eq.s32.totalorder %s21, 0
      %p313 = por %p311, %p312
      %p314 = scmp.ne.s32.totalorder %s303, %s306
      %p315 = scmp.eq.s32.totalorder %s26, 1
      %p316 = por %p314, %p315
      %p317 = scmp.ne.s32.totalorder %s306, %s307
      %p318 = scmp.eq.s32.totalorder %s26, 0
      %p319 = por %p317, %p318
      %p320 = scmp.ne.s32.totalorder %s306, %s307
      %p321 = scmp.eq.s32.totalorder %s27, 1
      %p322 = por %p320, %p321
      %p324 = scmp.ne.s32.totalorder %s307, %s323
      %p325 = scmp.eq.s32.totalorder %s27, 0
      %p326 = por %p324, %p325
      %s327 = ssub.s32 %s29, %s36
      %p328 = scmp.eq.s32.totalorder %s327, 0
      %s330 = sadd.s32 %s329, 1
      %s331 = scalar_select %p328, %s329, %s330
      %p334 = pneg %p328
      %p335 = scmp.eq.s32.totalorder %s21, 1
      %p336 = por %p334, %p335
      %p337 = scmp.ne.s32.totalorder %s329, %s332
      %p338 = scmp.eq.s32.totalorder %s21, 0
      %p339 = por %p337, %p338
      %p340 = scmp.ne.s32.totalorder %s329, %s332
      %p341 = scmp.eq.s32.totalorder %s26, 1
      %p342 = por %p340, %p341
      %p343 = scmp.ne.s32.totalorder %s332, %s333
      %p344 = scmp.eq.s32.totalorder %s26, 0
      %p345 = por %p343, %p344
      %p346 = scmp.ne.s32.totalorder %s332, %s333
      %p347 = scmp.eq.s32.totalorder %s27, 1
      %p348 = por %p346, %p347
      %p350 = scmp.ne.s32.totalorder %s333, %s349
      %p351 = scmp.eq.s32.totalorder %s27, 0
      %p352 = por %p350, %p351
      %s353 = ssub.s32 %s29, %s36
      %p354 = scmp.eq.s32.totalorder %s353, 0
      %s356 = sadd.s32 %s355, 1
      %s357 = scalar_select %p354, %s355, %s356
      %p360 = pneg %p354
      %p361 = scmp.eq.s32.totalorder %s21, 1
      %p362 = por %p360, %p361
      %p363 = scmp.ne.s32.totalorder %s355, %s358
      %p364 = scmp.eq.s32.totalorder %s21, 0
      %p365 = por %p363, %p364
      %p366 = scmp.ne.s32.totalorder %s355, %s358
      %p367 = scmp.eq.s32.totalorder %s26, 1
      %p368 = por %p366, %p367
      %p369 = scmp.ne.s32.totalorder %s358, %s359
      %p370 = scmp.eq.s32.totalorder %s26, 0
      %p371 = por %p369, %p370
      %p372 = scmp.ne.s32.totalorder %s358, %s359
      %p373 = scmp.eq.s32.totalorder %s27, 1
      %p374 = por %p372, %p373
      %p376 = scmp.ne.s32.totalorder %s359, %s375
      %p377 = scmp.eq.s32.totalorder %s27, 0
      %p378 = por %p376, %p377
      %s379 = ssub.s32 %s29, %s36
      %p380 = scmp.eq.s32.totalorder %s379, 0
      %s382 = sadd.s32 %s381, 1
      %s383 = scalar_select %p380, %s381, %s382
      %p386 = pneg %p380
      %p387 = scmp.eq.s32.totalorder %s21, 1
      %p388 = por %p386, %p387
      %p389 = scmp.ne.s32.totalorder %s381, %s384
      %p390 = scmp.eq.s32.totalorder %s21, 0
      %p391 = por %p389, %p390
      %p392 = scmp.ne.s32.totalorder %s381, %s384
      %p393 = scmp.eq.s32.totalorder %s26, 1
      %p394 = por %p392, %p393
      %p395 = scmp.ne.s32.totalorder %s384, %s385
      %p396 = scmp.eq.s32.totalorder %s26, 0
      %p397 = por %p395, %p396
      %p398 = scmp.ne.s32.totalorder %s384, %s385
      %p399 = scmp.eq.s32.totalorder %s27, 1
      %p400 = por %p398, %p399
      %p402 = scmp.ne.s32.totalorder %s385, %s401
      %p403 = scmp.eq.s32.totalorder %s27, 0
      %p404 = por %p402, %p403
      %s405 = ssub.s32 %s28, %s40
      %p406 = scmp.eq.s32.totalorder %s405, 0
      %s408 = sadd.s32 %s407, 1
      %s409 = scalar_select %p406, %s407, %s408
      %p412 = pneg %p406
      %p413 = scmp.eq.s32.totalorder %s21, 1
      %p414 = por %p412, %p413
      %p415 = scmp.ne.s32.totalorder %s407, %s410
      %p416 = scmp.eq.s32.totalorder %s21, 0
      %p417 = por %p415, %p416
      %p418 = scmp.ne.s32.totalorder %s407, %s410
      %p419 = scmp.eq.s32.totalorder %s26, 1
      %p420 = por %p418, %p419
      %p421 = scmp.ne.s32.totalorder %s410, %s411
      %p422 = scmp.eq.s32.totalorder %s26, 0
      %p423 = por %p421, %p422
      %p424 = scmp.ne.s32.totalorder %s410, %s411
      %p425 = scmp.eq.s32.totalorder %s27, 1
      %p426 = por %p424, %p425
      %p428 = scmp.ne.s32.totalorder %s411, %s427
      %p429 = scmp.eq.s32.totalorder %s27, 0
      %p430 = por %p428, %p429
      %p431 = scmp.le.s32.totalorder 1, %s21
      %p432 = scmp.lt.s32.totalorder %s21, 3
      %p433 = pnand %p431, %p432
      %p434 = pneg %p433
      // Predicated region
      $region9: #{_encoder_apply.1} parent=5 // pred_check
        _
      $region10: #{_encoder_apply.1} parent=5 // pred_check_branch
        %436 = sbr.rel (%p433) target = $region12
      $region11: #{_encoder_apply.1} parent=5 // pred_region
        %s437 = ssub.s32 %s21, 1
        // Predicated region
        $region13: #{_encoder_apply.1} parent=11 // pred_check
          %p438 = pneg %p59
        $region14: #{_encoder_apply.1} parent=11 // pred_check_branch
          %440 = sbr.rel (%p438) target = $region16
        $region15: #{_encoder_apply.1} parent=11 // pred_region
          %s441 = smul.u32 2, %s30
          %p442 = scmp.lt.s32.totalorder %s441, 1
          %s443 = scalar_select %p442, %s441, 1
          %s444 = smul.addr %s443, 8
          %s445 = scalar_lea.vmem %s0, %s444
          %s446 = smul.u32 2, %s30
        $region16: #{_encoder_apply.1} parent=11 // pred_fallthru
          _
        // Predicated region
        $region17: #{_encoder_apply.1} parent=11 // pred_check
          %p447 = pneg %p85
        $region18: #{_encoder_apply.1} parent=11 // pred_check_branch
          %449 = sbr.rel (%p447) target = $region20
        $region19: #{_encoder_apply.1} parent=11 // pred_region
          %s450 = smul.u32 2, %s30
          %p451 = scmp.lt.s32.totalorder %s450, 1
          %s452 = scalar_select %p451, %s450, 1
          %s453 = scalar_lea.vmem %s1, %s452
          %s454 = smul.u32 2, %s30
        $region20: #{_encoder_apply.1} parent=11 // pred_fallthru
          _
      $region12: #{_encoder_apply.1} parent=5 // pred_fallthru
        _
      %p455 = scmp.lt.s32.totalorder %s21, 2
      // Predicated region
      $region21: #{_encoder_apply.1} parent=5 // pred_check
        %p456 = pneg %p455
      $region22: #{_encoder_apply.1} parent=5 // pred_check_branch
        %458 = sbr.rel (%p456) target = $region24
      $region23: #{_encoder_apply.1} parent=5 // pred_region
        // Predicated region
        $region25: #{_encoder_apply.1} parent=23 // pred_check
          %p459 = pneg %p105
        $region26: #{_encoder_apply.1} parent=23 // pred_check_branch
          %461 = sbr.rel (%p459) target = $region28
        $region27: #{_encoder_apply.1} parent=23 // pred_region
          %p462 = scmp.lt.s32.totalorder %s29, 1
          %s463 = scalar_select %p462, %s29, 1
          %s464 = smul.addr %s463, 4
          %s465 = smul.addr %s464, 4
          %s466 = scalar_lea.vmem %s2, %s465
        $region28: #{_encoder_apply.1} parent=23 // pred_fallthru
          _
        // Predicated region
        $region29: #{_encoder_apply.1} parent=23 // pred_check
          %p467 = pneg %p131
        $region30: #{_encoder_apply.1} parent=23 // pred_check_branch
          %469 = sbr.rel (%p467) target = $region32
        $region31: #{_encoder_apply.1} parent=23 // pred_region
          %p470 = scmp.lt.s32.totalorder %s29, 1
          %s471 = scalar_select %p470, %s29, 1
          %s472 = scalar_lea.vmem %s3, %s471
        $region32: #{_encoder_apply.1} parent=23 // pred_fallthru
          _
        // Predicated region
        $region33: #{_encoder_apply.1} parent=23 // pred_check
          %p473 = pneg %p157
        $region34: #{_encoder_apply.1} parent=23 // pred_check_branch
          %475 = sbr.rel (%p473) target = $region36
        $region35: #{_encoder_apply.1} parent=23 // pred_region
          %p476 = scmp.lt.s32.totalorder %s29, 1
          %s477 = scalar_select %p476, %s29, 1
          %s478 = smul.addr %s477, 4
          %s479 = smul.addr %s478, 4
          %s480 = scalar_lea.vmem %s4, %s479
        $region36: #{_encoder_apply.1} parent=23 // pred_fallthru
          _
        // Predicated region
        $region37: #{_encoder_apply.1} parent=23 // pred_check
          %p481 = pneg %p183
        $region38: #{_encoder_apply.1} parent=23 // pred_check_branch
          %483 = sbr.rel (%p481) target = $region40
        $region39: #{_encoder_apply.1} parent=23 // pred_region
          %p484 = scmp.lt.s32.totalorder %s29, 1
          %s485 = scalar_select %p484, %s29, 1
          %s486 = scalar_lea.vmem %s5, %s485
        $region40: #{_encoder_apply.1} parent=23 // pred_fallthru
          _
        // Predicated region
        $region41: #{_encoder_apply.1} parent=23 // pred_check
          %p487 = pneg %p209
        $region42: #{_encoder_apply.1} parent=23 // pred_check_branch
          %489 = sbr.rel (%p487) target = $region44
        $region43: #{_encoder_apply.1} parent=23 // pred_region
          %p490 = scmp.lt.s32.totalorder %s29, 1
          %s491 = scalar_select %p490, %s29, 1
          %s492 = smul.addr %s491, 4
          %s493 = smul.addr %s492, 4
          %s494 = scalar_lea.vmem %s6, %s493
        $region44: #{_encoder_apply.1} parent=23 // pred_fallthru
          _
        // Predicated region
        $region45: #{_encoder_apply.1} parent=23 // pred_check
          %p495 = pneg %p235
        $region46: #{_encoder_apply.1} parent=23 // pred_check_branch
          %497 = sbr.rel (%p495) target = $region48
        $region47: #{_encoder_apply.1} parent=23 // pred_region
          %p498 = scmp.lt.s32.totalorder %s29, 1
          %s499 = scalar_select %p498, %s29, 1
          %s500 = scalar_lea.vmem %s7, %s499
        $region48: #{_encoder_apply.1} parent=23 // pred_fallthru
          _
        // Predicated region
        $region49: #{_encoder_apply.1} parent=23 // pred_check
          %p501 = pneg %p261
        $region50: #{_encoder_apply.1} parent=23 // pred_check_branch
          %503 = sbr.rel (%p501) target = $region52
        $region51: #{_encoder_apply.1} parent=23 // pred_region
          %p504 = scmp.lt.s32.totalorder %s29, 1
          %s505 = scalar_select %p504, %s29, 1
          %s506 = smul.addr %s505, 16
          %s507 = smul.addr %s506, 4
          %s508 = scalar_lea.vmem %s8, %s507
        $region52: #{_encoder_apply.1} parent=23 // pred_fallthru
          _
        // Predicated region
        $region53: #{_encoder_apply.1} parent=23 // pred_check
          %p509 = pneg %p287
        $region54: #{_encoder_apply.1} parent=23 // pred_check_branch
          %511 = sbr.rel (%p509) target = $region56
        $region55: #{_encoder_apply.1} parent=23 // pred_region
          %p512 = scmp.lt.s32.totalorder %s29, 1
          %s513 = scalar_select %p512, %s29, 1
          %s514 = scalar_lea.vmem %s9, %s513
        $region56: #{_encoder_apply.1} parent=23 // pred_fallthru
          _
        // Predicated region
        $region57: #{_encoder_apply.1} parent=23 // pred_check
          %p515 = pneg %p313
        $region58: #{_encoder_apply.1} parent=23 // pred_check_branch
          %517 = sbr.rel (%p515) target = $region60
        $region59: #{_encoder_apply.1} parent=23 // pred_region
          %p518 = scmp.lt.s32.totalorder %s29, 1
          %s519 = scalar_select %p518, %s29, 1
          %s520 = scalar_lea.vmem %s10, %s519
        $region60: #{_encoder_apply.1} parent=23 // pred_fallthru
          _
        // Predicated region
        $region61: #{_encoder_apply.1} parent=23 // pred_check
          %p521 = pneg %p339
        $region62: #{_encoder_apply.1} parent=23 // pred_check_branch
          %523 = sbr.rel (%p521) target = $region64
        $region63: #{_encoder_apply.1} parent=23 // pred_region
          %p524 = scmp.lt.s32.totalorder %s29, 1
          %s525 = scalar_select %p524, %s29, 1
          %s526 = scalar_lea.vmem %s11, %s525
        $region64: #{_encoder_apply.1} parent=23 // pred_fallthru
          _
        // Predicated region
        $region65: #{_encoder_apply.1} parent=23 // pred_check
          %p527 = pneg %p365
        $region66: #{_encoder_apply.1} parent=23 // pred_check_branch
          %529 = sbr.rel (%p527) target = $region68
        $region67: #{_encoder_apply.1} parent=23 // pred_region
          %p530 = scmp.lt.s32.totalorder %s29, 1
          %s531 = scalar_select %p530, %s29, 1
          %s532 = scalar_lea.vmem %s12, %s531
        $region68: #{_encoder_apply.1} parent=23 // pred_fallthru
          _
        // Predicated region
        $region69: #{_encoder_apply.1} parent=23 // pred_check
          %p533 = pneg %p391
        $region70: #{_encoder_apply.1} parent=23 // pred_check_branch
          %535 = sbr.rel (%p533) target = $region72
        $region71: #{_encoder_apply.1} parent=23 // pred_region
          %p536 = scmp.lt.s32.totalorder %s29, 1
          %s537 = scalar_select %p536, %s29, 1
          %s538 = scalar_lea.vmem %s13, %s537
        $region72: #{_encoder_apply.1} parent=23 // pred_fallthru
          _
      $region24: #{_encoder_apply.1} parent=5 // pred_fallthru
        _
      %p539 = scmp.le.s32.totalorder 1, %s21
      %p540 = scmp.lt.s32.totalorder %s21, 3
      %p541 = pnand %p539, %p540
      %p542 = pneg %p541
      // Predicated region
      $region73: #{_encoder_apply.1} parent=5 // pred_check
        _
      $region74: #{_encoder_apply.1} parent=5 // pred_check_branch
        %544 = sbr.rel (%p541) target = $region76
      $region75: #{_encoder_apply.1} parent=5 // pred_region
        %s545 = ssub.s32 %s21, 1
        %s546 = smul.u32 2, %s30
        %p547 = scmp.lt.s32.totalorder %s546, 1
        %s548 = scalar_select %p547, %s546, 1
        %s549 = smul.addr %s548, 8
        %s550 = scalar_lea.vmem %s0, %s549
        %p551 = pneg %p59
        %p552 = pneg %p56
        %s553 = smul.u32 2, %s30
        %p554 = scmp.lt.s32.totalorder %s553, 1
        %s555 = scalar_select %p554, %s553, 1
        %s556 = scalar_lea.vmem %s1, %s555
        %p557 = pneg %p85
        %p558 = pneg %p82
        %p559 = scmp.lt.s32.totalorder %s31, 1
        %s560 = scalar_select %p559, %s31, 1
        %s561 = smul.addr %s560, 4
        %s562 = smul.addr %s561, 4
        %s563 = scalar_lea.vmem %s2, %s562
        %p564 = pneg %p111
        %p565 = pneg %p108
        %p566 = scmp.lt.s32.totalorder %s31, 1
        %s567 = scalar_select %p566, %s31, 1
        %s568 = scalar_lea.vmem %s3, %s567
        %p569 = pneg %p137
        %p570 = pneg %p134
        %p571 = scmp.lt.s32.totalorder %s31, 1
        %s572 = scalar_select %p571, %s31, 1
        %s573 = smul.addr %s572, 4
        %s574 = smul.addr %s573, 4
        %s575 = scalar_lea.vmem %s4, %s574
        %p576 = pneg %p163
        %p577 = pneg %p160
        %p578 = scmp.lt.s32.totalorder %s31, 1
        %s579 = scalar_select %p578, %s31, 1
        %s580 = scalar_lea.vmem %s5, %s579
        %p581 = pneg %p189
        %p582 = pneg %p186
        %p583 = scmp.lt.s32.totalorder %s31, 1
        %s584 = scalar_select %p583, %s31, 1
        %s585 = smul.addr %s584, 4
        %s586 = smul.addr %s585, 4
        %s587 = scalar_lea.vmem %s6, %s586
        %p588 = pneg %p215
        %p589 = pneg %p212
        %p590 = scmp.lt.s32.totalorder %s31, 1
        %s591 = scalar_select %p590, %s31, 1
        %s592 = scalar_lea.vmem %s7, %s591
        %p593 = pneg %p241
        %p594 = pneg %p238
        %p595 = scmp.lt.s32.totalorder %s31, 1
        %s596 = scalar_select %p595, %s31, 1
        %s597 = smul.addr %s596, 16
        %s598 = smul.addr %s597, 4
        %s599 = scalar_lea.vmem %s8, %s598
        %p600 = pneg %p267
        %p601 = pneg %p264
        %p602 = scmp.lt.s32.totalorder %s31, 1
        %s603 = scalar_select %p602, %s31, 1
        %s604 = scalar_lea.vmem %s9, %s603
        %p605 = pneg %p293
        %p606 = pneg %p290
        %p607 = scmp.lt.s32.totalorder %s31, 1
        %s608 = scalar_select %p607, %s31, 1
        %s609 = scalar_lea.vmem %s10, %s608
        %p610 = pneg %p319
        %p611 = pneg %p316
        %p612 = scmp.lt.s32.totalorder %s31, 1
        %s613 = scalar_select %p612, %s31, 1
        %s614 = scalar_lea.vmem %s11, %s613
        %p615 = pneg %p345
        %p616 = pneg %p342
        %p617 = scmp.lt.s32.totalorder %s31, 1
        %s618 = scalar_select %p617, %s31, 1
        %s619 = scalar_lea.vmem %s12, %s618
        %p620 = pneg %p371
        %p621 = pneg %p368
        %p622 = scmp.lt.s32.totalorder %s31, 1
        %s623 = scalar_select %p622, %s31, 1
        %s624 = scalar_lea.vmem %s13, %s623
        %p625 = pneg %p397
        %p626 = pneg %p394
        %p627 = pneg %p423
        %p628 = pneg %p420
        %s629 = smul.u32 2, %s30
        %p630 = scmp.lt.s32.totalorder %s629, 1
        %s631 = scalar_select %p630, %s629, 1
        %s632 = smul.addr %s631, 8
        %s633 = scalar_lea.vmem %s0, %s632
        %s634 = smul.u32 2, %s30
        %s635 = smul.u32 2, %s30
        %p636 = scmp.lt.s32.totalorder %s635, 1
        %s637 = scalar_select %p636, %s635, 1
        %s638 = scalar_lea.vmem %s1, %s637
        %s639 = smul.u32 2, %s30
        %p640 = scmp.lt.s32.totalorder %s31, 1
        %s641 = scalar_select %p640, %s31, 1
        %s642 = smul.addr %s641, 4
        %s643 = smul.addr %s642, 4
        %s644 = scalar_lea.vmem %s2, %s643
        %p645 = scmp.lt.s32.totalorder %s31, 1
        %s646 = scalar_select %p645, %s31, 1
        %s647 = scalar_lea.vmem %s3, %s646
        %p648 = scmp.lt.s32.totalorder %s31, 1
        %s649 = scalar_select %p648, %s31, 1
        %s650 = smul.addr %s649, 4
        %s651 = smul.addr %s650, 4
        %s652 = scalar_lea.vmem %s4, %s651
        %p653 = scmp.lt.s32.totalorder %s31, 1
        %s654 = scalar_select %p653, %s31, 1
        %s655 = scalar_lea.vmem %s5, %s654
        %p656 = scmp.lt.s32.totalorder %s31, 1
        %s657 = scalar_select %p656, %s31, 1
        %s658 = smul.addr %s657, 4
        %s659 = smul.addr %s658, 4
        %s660 = scalar_lea.vmem %s6, %s659
        %p661 = scmp.lt.s32.totalorder %s31, 1
        %s662 = scalar_select %p661, %s31, 1
        %s663 = scalar_lea.vmem %s7, %s662
        %p664 = scmp.lt.s32.totalorder %s31, 1
        %s665 = scalar_select %p664, %s31, 1
        %s666 = smul.addr %s665, 16
        %s667 = smul.addr %s666, 4
        %s668 = scalar_lea.vmem %s8, %s667
        %p669 = scmp.lt.s32.totalorder %s31, 1
        %s670 = scalar_select %p669, %s31, 1
        %s671 = scalar_lea.vmem %s9, %s670
        %p672 = scmp.lt.s32.totalorder %s31, 1
        %s673 = scalar_select %p672, %s31, 1
        %s674 = scalar_lea.vmem %s10, %s673
        %p675 = scmp.lt.s32.totalorder %s31, 1
        %s676 = scalar_select %p675, %s31, 1
        %s677 = scalar_lea.vmem %s11, %s676
        %p678 = scmp.lt.s32.totalorder %s31, 1
        %s679 = scalar_select %p678, %s31, 1
        %s680 = scalar_lea.vmem %s12, %s679
        %p681 = scmp.lt.s32.totalorder %s31, 1
        %s682 = scalar_select %p681, %s31, 1
        %s683 = scalar_lea.vmem %s13, %s682
        %s684 = smul.u32 2, %s30
        %p686 = scmp.eq.s32.totalorder %s31, 0
        // Predicated region
        $region77: #{_encoder_apply.1} parent=75 // pred_check
          %p687 = pneg %p686
        $region78: #{_encoder_apply.1} parent=75 // pred_check_branch
          %689 = sbr.rel (%p687) target = $region80
        $region79: #{_encoder_apply.1} parent=75 // pred_region
          %v690 = vld [vmem:[%s633] sm:$0xff]
          %v691 = vld [vmem:[%s633 + $0x8] sm:$0xff]
          %vm692 = vcmask 261120
          %693 = vst.msk [vmem:[#allocation2] sm:$0xff] %vm692, %v690
          %694 = vst.msk [vmem:[#allocation2 + $0x8] sm:$0xff] %vm692, %v691
        $region80: #{_encoder_apply.1} parent=75 // pred_fallthru
          _
        %v695 = vld [vmem:[#allocation2] sm:$0xff]
        %v696 = vld [vmem:[#allocation2 + $0x8] sm:$0xff]
        %v697 = vpack.c.bf16 %v696, %v695
        %v698 = vld [vmem:[%s644] sm:$0xf]
        %v699 = vld [vmem:[%s644 + $0x4] sm:$0xf]
        %v700 = vld [vmem:[%s644 + $0x8] sm:$0xf]
        %v701 = vld [vmem:[%s644 + $0xc] sm:$0xf]
        %v702 = vld [vmem:[%s647] sm:$0x1]
        %v704 = vlaneseq
        %v705 = vshrl.u32 %v704, 7
        %v706 = vsub.s32 0, %v705
        %v707 = vrot.slane %v702, %v706
        %v713 = vunpack.c.l.b16 %v698
        %v714 = vunpack.c.l.b16 %v699
        %v715 = vunpack.c.l.b16 %v700
        %v716 = vunpack.c.l.b16 %v701
        %v717 = vpack.c.b16 %v714, %v713
        %v718 = vpack.c.b16 %v716, %v715
        %vm721 = vcmask 261120
        %v723 = vsel %vm721, %v697, 0
        %725 = vmatprep.subr.bf16.mxu0 0
        %726 = vmatpush1.bf16.msra.mxu0 %v717
        %727 = vmatprep.subr.bf16.mxu0 0
        %728 = vmatpush1.bf16.msra.mxu0 %v718
        %729 = vmatprep.subr.bf16.mxu0 0
        %730 = vmatpush1.bf16.msra.mxu0 0
        %731 = vmatprep.subr.bf16.mxu0 0
        %732 = vmatpush1.bf16.msra.mxu0 0
        %733 = vmatprep.subr.bf16.mxu0 0
        %734 = vmatpush1.bf16.msra.mxu0 0
        %735 = vmatprep.subr.bf16.mxu0 0
        %736 = vmatpush1.bf16.msra.mxu0 0
        %737 = vmatprep.subr.bf16.mxu0 0
        %738 = vmatpush1.bf16.msra.mxu0 0
        %739 = vmatprep.subr.bf16.mxu0 0
        %740 = vmatpush1.bf16.msra.mxu0 0
        %741 = vmatprep.subr.bf16.mxu0 0
        %742 = vmatpush1.bf16.msra.mxu0 0
        %743 = vmatprep.subr.bf16.mxu0 0
        %744 = vmatpush1.bf16.msra.mxu0 0
        %745 = vmatprep.subr.bf16.mxu0 0
        %746 = vmatpush1.bf16.msra.mxu0 0
        %747 = vmatprep.subr.bf16.mxu0 0
        %748 = vmatpush1.bf16.msra.mxu0 0
        %749 = vmatprep.subr.bf16.mxu0 0
        %750 = vmatpush1.bf16.msra.mxu0 0
        %751 = vmatprep.subr.bf16.mxu0 0
        %752 = vmatpush1.bf16.msra.mxu0 0
        %753 = vmatprep.subr.bf16.mxu0 0
        %754 = vmatpush1.bf16.msra.mxu0 0
        %755 = vmatprep.subr.bf16.mxu0 0
        %756 = vmatpush1.bf16.msra.mxu0 0
        %757 = vmatprep.mubr.bf16.mxu0 0
        %758 = vmatmul.mubr.bf16.gmra.mrb[0].mxu0 %v723
        %v759 = vpop.f32.mrb[0].mxu0
        %v760 = vadd.f32 %v707, %v759
        %v761 = vpop.f32.mrb[0].mxu0
        %v762 = vpop.f32.mrb[0].mxu0
        %v763 = vadd.f32 %v707, %v762
        %v764 = vpop.f32.mrb[0].mxu0
        %765 = vdwg.mxu0
        %v766 = vpack.c.bf16 %v763, %v760
        %vm767 = vcmask 785408
        %768 = vst.msk [vmem:[#allocation3] sm:$0xff] %vm767, %v766
        %v769 = vld [vmem:[%s638] sm:$0x1]
        %v770 = vld [vmem:[%s638 + $0x1] sm:$0x1]
        %v771 = vld [vmem:[#allocation3] sm:$0xff]
        %v773 = vunpack.c.l.b16 %v771
        %v774 = vunpack.c.h.b16 %v771
        %v775 = vpack.c.b16 %v773, %v773
        %v776 = vpack.c.b16 %v774, %v774
        %v779 = vlaneseq
        %v780 = vshrl.u32 %v779, 7
        %v781 = vsub.s32 0, %v780
        %v782 = vrot.slane %v769, %v781
        %v783 = vlaneseq
        %v784 = vshrl.u32 %v783, 7
        %v785 = vsub.s32 0, %v784
        %v786 = vrot.slane %v770, %v785
        %789 = vrot.lane.b32.xlu0 %v775, 96
        %v790 = vpop.permute.xlu0 %789
        %vm791 = vcmask 64512
        %v793 = vsel %vm791, %v775, 0
        %v796 = vsel %vm791, %v790, 0
        %798 = vmatprep.subr.bf16.mxu0 0
        %799 = vmatpush1.bf16.xpose.msra.mxu0 %v796
        %800 = vmatprep.subr.bf16.mxu0 0
        %801 = vmatpush1.bf16.xpose.msra.mxu0 0
        %802 = vmatprep.subr.bf16.mxu0 0
        %803 = vmatpush1.bf16.xpose.msra.mxu0 0
        %804 = vmatprep.subr.bf16.mxu0 0
        %805 = vmatpush1.bf16.xpose.msra.mxu0 0
        %806 = vmatprep.subr.bf16.mxu0 0
        %807 = vmatpush1.bf16.xpose.msra.mxu0 0
        %808 = vmatprep.subr.bf16.mxu0 0
        %809 = vmatpush1.bf16.xpose.msra.mxu0 0
        %810 = vmatprep.subr.bf16.mxu0 0
        %811 = vmatpush1.bf16.xpose.msra.mxu0 0
        %812 = vmatprep.subr.bf16.mxu0 0
        %813 = vmatpush1.bf16.xpose.msra.mxu0 0
        %814 = vmatprep.subr.bf16.mxu0 0
        %815 = vmatpush1.bf16.xpose.msra.mxu0 0
        %816 = vmatprep.subr.bf16.mxu0 0
        %817 = vmatpush1.bf16.xpose.msra.mxu0 0
        %818 = vmatprep.subr.bf16.mxu0 0
        %819 = vmatpush1.bf16.xpose.msra.mxu0 0
        %820 = vmatprep.subr.bf16.mxu0 0
        %821 = vmatpush1.bf16.xpose.msra.mxu0 0
        %822 = vmatprep.subr.bf16.mxu0 0
        %823 = vmatpush1.bf16.xpose.msra.mxu0 0
        %824 = vmatprep.subr.bf16.mxu0 0
        %825 = vmatpush1.bf16.xpose.msra.mxu0 0
        %826 = vmatprep.subr.bf16.mxu0 0
        %827 = vmatpush1.bf16.xpose.msra.mxu0 0
        %828 = vmatprep.subr.bf16.mxu0 0
        %829 = vmatpush1.bf16.xpose.msra.mxu0 0
        %830 = vmatprep.mubr.bf16.mxu0 0
        %831 = vmatmul.mubr.bf16.gmra.mrb[0].mxu0 %v793
        %v832 = vpop.f32.mrb[0].mxu0
        %v833 = vadd.f32 %v782, %v832
        %v834 = vpop.f32.mrb[0].mxu0
        %v835 = vpop.f32.mrb[0].mxu0
        %v836 = vpop.f32.mrb[0].mxu0
        %837 = vdwg.mxu0
        %838 = vrot.lane.b32.xlu0 %v776, 96
        %v839 = vpop.permute.xlu0 %838
        %v841 = vsel %vm791, %v776, 0
        %v844 = vsel %vm791, %v839, 0
        %846 = vmatprep.subr.bf16.mxu0 0
        %847 = vmatpush1.bf16.xpose.msra.mxu0 %v844
        %848 = vmatprep.subr.bf16.mxu0 0
        %849 = vmatpush1.bf16.xpose.msra.mxu0 0
        %850 = vmatprep.subr.bf16.mxu0 0
        %851 = vmatpush1.bf16.xpose.msra.mxu0 0
        %852 = vmatprep.subr.bf16.mxu0 0
        %853 = vmatpush1.bf16.xpose.msra.mxu0 0
        %854 = vmatprep.subr.bf16.mxu0 0
        %855 = vmatpush1.bf16.xpose.msra.mxu0 0
        %856 = vmatprep.subr.bf16.mxu0 0
        %857 = vmatpush1.bf16.xpose.msra.mxu0 0
        %858 = vmatprep.subr.bf16.mxu0 0
        %859 = vmatpush1.bf16.xpose.msra.mxu0 0
        %860 = vmatprep.subr.bf16.mxu0 0
        %861 = vmatpush1.bf16.xpose.msra.mxu0 0
        %862 = vmatprep.subr.bf16.mxu0 0
        %863 = vmatpush1.bf16.xpose.msra.mxu0 0
        %864 = vmatprep.subr.bf16.mxu0 0
        %865 = vmatpush1.bf16.xpose.msra.mxu0 0
        %866 = vmatprep.subr.bf16.mxu0 0
        %867 = vmatpush1.bf16.xpose.msra.mxu0 0
        %868 = vmatprep.subr.bf16.mxu0 0
        %869 = vmatpush1.bf16.xpose.msra.mxu0 0
        %870 = vmatprep.subr.bf16.mxu0 0
        %871 = vmatpush1.bf16.xpose.msra.mxu0 0
        %872 = vmatprep.subr.bf16.mxu0 0
        %873 = vmatpush1.bf16.xpose.msra.mxu0 0
        %874 = vmatprep.subr.bf16.mxu0 0
        %875 = vmatpush1.bf16.xpose.msra.mxu0 0
        %876 = vmatprep.subr.bf16.mxu0 0
        %877 = vmatpush1.bf16.xpose.msra.mxu0 0
        %878 = vmatprep.mubr.bf16.mxu0 0
        %879 = vmatmul.mubr.bf16.gmra.mrb[0].mxu0 %v841
        %v880 = vpop.f32.mrb[0].mxu0
        %v881 = vadd.f32 %v786, %v880
        %v882 = vpop.f32.mrb[0].mxu0
        %v883 = vpop.f32.mrb[0].mxu0
        %v884 = vpop.f32.mrb[0].mxu0
        %885 = vdwg.mxu0
        %v886 = vsel %vm791, %v833, -inf
        %887 = vmax.xlane.f32.xlu0 %v886
        %v888 = vpop.xlane.xlu0 %887
        %v889 = vsel %vm791, %v881, -inf
        %890 = vmax.xlane.f32.xlu0 %v889
        %v891 = vpop.xlane.xlu0 %890
        %v892 = vsub.f32 %v833, %v888
        %v893 = vsub.f32 %v881, %v891
        %v894 = vmul.f32 %v892, 1.442695
        %v895 = vpow.pop %v894
        %v896 = vmul.f32 %v893, 1.442695
        %v897 = vpow.pop %v896
        %v898 = vsel %vm791, %v895, 0.0
        %899 = vadd.xlane.f32.xlu0 %v898
        %v900 = vpop.xlane.xlu0 %899
        %v901 = vsel %vm791, %v897, 0.0
        %902 = vadd.xlane.f32.xlu0 %v901
        %v903 = vpop.xlane.xlu0 %902
        %v904 = vrcp.pop %v900
        %v905 = vrcp.pop %v903
        %v906 = vmul.f32 %v895, %v904
        %v907 = vmul.f32 %v897, %v905
        %v908 = vpack.c.bf16 %v906, %v906
        %v909 = vpack.c.bf16 %v907, %v907
        %910 = vrot.lane.b32.xlu0 %v775, 64
        %v911 = vpop.permute.xlu0 %910
        %v913 = vsel %vm791, %v908, 0
        %vm915 = vcmask 1043456
        %v917 = vsel %vm915, %v911, 0
        %919 = vmatprep.subr.bf16.mxu0 0
        %920 = vmatpush1.bf16.msra.mxu0 %v917
        %921 = vmatprep.subr.bf16.mxu0 0
        %922 = vmatpush1.bf16.msra.mxu0 0
        %923 = vmatprep.subr.bf16.mxu0 0
        %924 = vmatpush1.bf16.msra.mxu0 0
        %925 = vmatprep.subr.bf16.mxu0 0
        %926 = vmatpush1.bf16.msra.mxu0 0
        %927 = vmatprep.subr.bf16.mxu0 0
        %928 = vmatpush1.bf16.msra.mxu0 0
        %929 = vmatprep.subr.bf16.mxu0 0
        %930 = vmatpush1.bf16.msra.mxu0 0
        %931 = vmatprep.subr.bf16.mxu0 0
        %932 = vmatpush1.bf16.msra.mxu0 0
        %933 = vmatprep.subr.bf16.mxu0 0
        %934 = vmatpush1.bf16.msra.mxu0 0
        %935 = vmatprep.subr.bf16.mxu0 0
        %936 = vmatpush1.bf16.msra.mxu0 0
        %937 = vmatprep.subr.bf16.mxu0 0
        %938 = vmatpush1.bf16.msra.mxu0 0
        %939 = vmatprep.subr.bf16.mxu0 0
        %940 = vmatpush1.bf16.msra.mxu0 0
        %941 = vmatprep.subr.bf16.mxu0 0
        %942 = vmatpush1.bf16.msra.mxu0 0
        %943 = vmatprep.subr.bf16.mxu0 0
        %944 = vmatpush1.bf16.msra.mxu0 0
        %945 = vmatprep.subr.bf16.mxu0 0
        %946 = vmatpush1.bf16.msra.mxu0 0
        %947 = vmatprep.subr.bf16.mxu0 0
        %948 = vmatpush1.bf16.msra.mxu0 0
        %949 = vmatprep.subr.bf16.mxu0 0
        %950 = vmatpush1.bf16.msra.mxu0 0
        %951 = vmatprep.mubr.bf16.mxu0 0
        %952 = vmatmul.mubr.bf16.gmra.mrb[0].mxu0 %v913
        %v953 = vpop.f32.mrb[0].mxu0
        %v954 = vadd.f32 0.0, %v953
        %v955 = vpop.f32.mrb[0].mxu0
        %v956 = vpop.f32.mrb[0].mxu0
        %v957 = vpop.f32.mrb[0].mxu0
        %958 = vdwg.mxu0
        %959 = vrot.lane.b32.xlu0 %v776, 64
        %v960 = vpop.permute.xlu0 %959
        %v962 = vsel %vm791, %v909, 0
        %v965 = vsel %vm915, %v960, 0
        %967 = vmatprep.subr.bf16.mxu0 0
        %968 = vmatpush1.bf16.msra.mxu0 %v965
        %969 = vmatprep.subr.bf16.mxu0 0
        %970 = vmatpush1.bf16.msra.mxu0 0
        %971 = vmatprep.subr.bf16.mxu0 0
        %972 = vmatpush1.bf16.msra.mxu0 0
        %973 = vmatprep.subr.bf16.mxu0 0
        %974 = vmatpush1.bf16.msra.mxu0 0
        %975 = vmatprep.subr.bf16.mxu0 0
        %976 = vmatpush1.bf16.msra.mxu0 0
        %977 = vmatprep.subr.bf16.mxu0 0
        %978 = vmatpush1.bf16.msra.mxu0 0
        %979 = vmatprep.subr.bf16.mxu0 0
        %980 = vmatpush1.bf16.msra.mxu0 0
        %981 = vmatprep.subr.bf16.mxu0 0
        %982 = vmatpush1.bf16.msra.mxu0 0
        %983 = vmatprep.subr.bf16.mxu0 0
        %984 = vmatpush1.bf16.msra.mxu0 0
        %985 = vmatprep.subr.bf16.mxu0 0
        %986 = vmatpush1.bf16.msra.mxu0 0
        %987 = vmatprep.subr.bf16.mxu0 0
        %988 = vmatpush1.bf16.msra.mxu0 0
        %989 = vmatprep.subr.bf16.mxu0 0
        %990 = vmatpush1.bf16.msra.mxu0 0
        %991 = vmatprep.subr.bf16.mxu0 0
        %992 = vmatpush1.bf16.msra.mxu0 0
        %993 = vmatprep.subr.bf16.mxu0 0
        %994 = vmatpush1.bf16.msra.mxu0 0
        %995 = vmatprep.subr.bf16.mxu0 0
        %996 = vmatpush1.bf16.msra.mxu0 0
        %997 = vmatprep.subr.bf16.mxu0 0
        %998 = vmatpush1.bf16.msra.mxu0 0
        %999 = vmatprep.mubr.bf16.mxu0 0
        %1000 = vmatmul.mubr.bf16.gmra.mrb[0].mxu0 %v962
        %v1001 = vpop.f32.mrb[0].mxu0
        %v1002 = vadd.f32 0.0, %v1001
        %v1003 = vpop.f32.mrb[0].mxu0
        %v1004 = vpop.f32.mrb[0].mxu0
        %v1005 = vpop.f32.mrb[0].mxu0
        %1006 = vdwg.mxu0
        %v1007 = vpack.c.bf16 %v1002, %v954
        %1008 = vst.msk [vmem:[#allocation4] sm:$0xff] %vm791, %v1007
        %v1009 = vld [vmem:[#allocation3] sm:$0xff]
        %v1011 = vunpack.c.l.b16 %v1009
        %v1012 = vunpack.c.h.b16 %v1009
        %v1013 = vpack.c.b16 %v1011, %v1011
        %1014 = vrot.lane.b32.xlu0 %v1013, 120
        %v1015 = vpop.permute.xlu0 %1014
        %1016 = vrot.lane.b32.xlu0 %v1013, 88
        %v1017 = vpop.permute.xlu0 %1016
        %v1019 = vsel %vm791, %v1015, 0
        %v1022 = vsel %vm791, %v1017, 0
        %1024 = vmatprep.subr.bf16.mxu0 0
        %1025 = vmatpush1.bf16.xpose.msra.mxu0 %v1022
        %1026 = vmatprep.subr.bf16.mxu0 0
        %1027 = vmatpush1.bf16.xpose.msra.mxu0 0
        %1028 = vmatprep.subr.bf16.mxu0 0
        %1029 = vmatpush1.bf16.xpose.msra.mxu0 0
        %1030 = vmatprep.subr.bf16.mxu0 0
        %1031 = vmatpush1.bf16.xpose.msra.mxu0 0
        %1032 = vmatprep.subr.bf16.mxu0 0
        %1033 = vmatpush1.bf16.xpose.msra.mxu0 0
        %1034 = vmatprep.subr.bf16.mxu0 0
        %1035 = vmatpush1.bf16.xpose.msra.mxu0 0
        %1036 = vmatprep.subr.bf16.mxu0 0
        %1037 = vmatpush1.bf16.xpose.msra.mxu0 0
        %1038 = vmatprep.subr.bf16.mxu0 0
        %1039 = vmatpush1.bf16.xpose.msra.mxu0 0
        %1040 = vmatprep.subr.bf16.mxu0 0
        %1041 = vmatpush1.bf16.xpose.msra.mxu0 0
        %1042 = vmatprep.subr.bf16.mxu0 0
        %1043 = vmatpush1.bf16.xpose.msra.mxu0 0
        %1044 = vmatprep.subr.bf16.mxu0 0
        %1045 = vmatpush1.bf16.xpose.msra.mxu0 0
        %1046 = vmatprep.subr.bf16.mxu0 0
        %1047 = vmatpush1.bf16.xpose.msra.mxu0 0
        %1048 = vmatprep.subr.bf16.mxu0 0
        %1049 = vmatpush1.bf16.xpose.msra.mxu0 0
        %1050 = vmatprep.subr.bf16.mxu0 0
        %1051 = vmatpush1.bf16.xpose.msra.mxu0 0
        %1052 = vmatprep.subr.bf16.mxu0 0
        %1053 = vmatpush1.bf16.xpose.msra.mxu0 0
        %1054 = vmatprep.subr.bf16.mxu0 0
        %1055 = vmatpush1.bf16.xpose.msra.mxu0 0
        %1056 = vmatprep.mubr.bf16.mxu0 0
        %1057 = vmatmul.mubr.bf16.gmra.mrb[0].mxu0 %v1019
        %v1058 = vpop.f32.mrb[0].mxu0
        %v1059 = vadd.f32 %v782, %v1058
        %v1060 = vpop.f32.mrb[0].mxu0
        %v1061 = vpop.f32.mrb[0].mxu0
        %v1062 = vpop.f32.mrb[0].mxu0
        %1063 = vdwg.mxu0
        %v1064 = vpack.c.b16 %v1012, %v1012
        %1065 = vrot.lane.b32.xlu0 %v1064, 120
        %v1066 = vpop.permute.xlu0 %1065
        %1067 = vrot.lane.b32.xlu0 %v1064, 88
        %v1068 = vpop.permute.xlu0 %1067
        %v1070 = vsel %vm791, %v1066, 0
        %v1073 = vsel %vm791, %v1068, 0
        %1075 = vmatprep.subr.bf16.mxu0 0
        %1076 = vmatpush1.bf16.xpose.msra.mxu0 %v1073
        %1077 = vmatprep.subr.bf16.mxu0 0
        %1078 = vmatpush1.bf16.xpose.msra.mxu0 0
        %1079 = vmatprep.subr.bf16.mxu0 0
        %1080 = vmatpush1.bf16.xpose.msra.mxu0 0
        %1081 = vmatprep.subr.bf16.mxu0 0
        %1082 = vmatpush1.bf16.xpose.msra.mxu0 0
        %1083 = vmatprep.subr.bf16.mxu0 0
        %1084 = vmatpush1.bf16.xpose.msra.mxu0 0
        %1085 = vmatprep.subr.bf16.mxu0 0
        %1086 = vmatpush1.bf16.xpose.msra.mxu0 0
        %1087 = vmatprep.subr.bf16.mxu0 0
        %1088 = vmatpush1.bf16.xpose.msra.mxu0 0
        %1089 = vmatprep.subr.bf16.mxu0 0
        %1090 = vmatpush1.bf16.xpose.msra.mxu0 0
        %1091 = vmatprep.subr.bf16.mxu0 0
        %1092 = vmatpush1.bf16.xpose.msra.mxu0 0
        %1093 = vmatprep.subr.bf16.mxu0 0
        %1094 = vmatpush1.bf16.xpose.msra.mxu0 0
        %1095 = vmatprep.subr.bf16.mxu0 0
        %1096 = vmatpush1.bf16.xpose.msra.mxu0 0
        %1097 = vmatprep.subr.bf16.mxu0 0
        %1098 = vmatpush1.bf16.xpose.msra.mxu0 0
        %1099 = vmatprep.subr.bf16.mxu0 0
        %1100 = vmatpush1.bf16.xpose.msra.mxu0 0
        %1101 = vmatprep.subr.bf16.mxu0 0
        %1102 = vmatpush1.bf16.xpose.msra.mxu0 0
        %1103 = vmatprep.subr.bf16.mxu0 0
        %1104 = vmatpush1.bf16.xpose.msra.mxu0 0
        %1105 = vmatprep.subr.bf16.mxu0 0
        %1106 = vmatpush1.bf16.xpose.msra.mxu0 0
        %1107 = vmatprep.mubr.bf16.mxu0 0
        %1108 = vmatmul.mubr.bf16.gmra.mrb[0].mxu0 %v1070
        %v1109 = vpop.f32.mrb[0].mxu0
        %v1110 = vadd.f32 %v786, %v1109
        %v1111 = vpop.f32.mrb[0].mxu0
        %v1112 = vpop.f32.mrb[0].mxu0
        %v1113 = vpop.f32.mrb[0].mxu0
        %1114 = vdwg.mxu0
        %v1115 = vsel %vm791, %v1059, -inf
        %1116 = vmax.xlane.f32.xlu0 %v1115
        %v1117 = vpop.xlane.xlu0 %1116
        %v1118 = vsel %vm791, %v1110, -inf
        %1119 = vmax.xlane.f32.xlu0 %v1118
        %v1120 = vpop.xlane.xlu0 %1119
        %v1121 = vsub.f32 %v1059, %v1117
        %v1122 = vsub.f32 %v1110, %v1120
        %v1123 = vmul.f32 %v1121, 1.442695
        %v1124 = vpow.pop %v1123
        %v1125 = vmul.f32 %v1122, 1.442695
        %v1126 = vpow.pop %v1125
        %v1127 = vsel %vm791, %v1124, 0.0
        %1128 = vadd.xlane.f32.xlu0 %v1127
        %v1129 = vpop.xlane.xlu0 %1128
        %v1130 = vsel %vm791, %v1126, 0.0
        %1131 = vadd.xlane.f32.xlu0 %v1130
        %v1132 = vpop.xlane.xlu0 %1131
        %v1133 = vrcp.pop %v1129
        %v1134 = vrcp.pop %v1132
        %v1135 = vmul.f32 %v1124, %v1133
        %v1136 = vmul.f32 %v1126, %v1134
        %v1137 = vpack.c.bf16 %v1135, %v1135
        %v1138 = vpack.c.bf16 %v1136, %v1136
        %1139 = vrot.lane.b32.xlu0 %v1013, 56
        %v1140 = vpop.permute.xlu0 %1139
        %v1142 = vsel %vm791, %v1137, 0
        %v1145 = vsel %vm915, %v1140, 0
        %1147 = vmatprep.subr.bf16.mxu0 0
        %1148 = vmatpush1.bf16.msra.mxu0 %v1145
        %1149 = vmatprep.subr.bf16.mxu0 0
        %1150 = vmatpush1.bf16.msra.mxu0 0
        %1151 = vmatprep.subr.bf16.mxu0 0
        %1152 = vmatpush1.bf16.msra.mxu0 0
        %1153 = vmatprep.subr.bf16.mxu0 0
        %1154 = vmatpush1.bf16.msra.mxu0 0
        %1155 = vmatprep.subr.bf16.mxu0 0
        %1156 = vmatpush1.bf16.msra.mxu0 0
        %1157 = vmatprep.subr.bf16.mxu0 0
        %1158 = vmatpush1.bf16.msra.mxu0 0
        %1159 = vmatprep.subr.bf16.mxu0 0
        %1160 = vmatpush1.bf16.msra.mxu0 0
        %1161 = vmatprep.subr.bf16.mxu0 0
        %1162 = vmatpush1.bf16.msra.mxu0 0
        %1163 = vmatprep.subr.bf16.mxu0 0
        %1164 = vmatpush1.bf16.msra.mxu0 0
        %1165 = vmatprep.subr.bf16.mxu0 0
        %1166 = vmatpush1.bf16.msra.mxu0 0
        %1167 = vmatprep.subr.bf16.mxu0 0
        %1168 = vmatpush1.bf16.msra.mxu0 0
        %1169 = vmatprep.subr.bf16.mxu0 0
        %1170 = vmatpush1.bf16.msra.mxu0 0
        %1171 = vmatprep.subr.bf16.mxu0 0
        %1172 = vmatpush1.bf16.msra.mxu0 0
        %1173 = vmatprep.subr.bf16.mxu0 0
        %1174 = vmatpush1.bf16.msra.mxu0 0
        %1175 = vmatprep.subr.bf16.mxu0 0
        %1176 = vmatpush1.bf16.msra.mxu0 0
        %1177 = vmatprep.subr.bf16.mxu0 0
        %1178 = vmatpush1.bf16.msra.mxu0 0
        %1179 = vmatprep.mubr.bf16.mxu0 0
        %1180 = vmatmul.mubr.bf16.gmra.mrb[0].mxu0 %v1142
        %v1181 = vpop.f32.mrb[0].mxu0
        %v1182 = vadd.f32 0.0, %v1181
        %v1183 = vpop.f32.mrb[0].mxu0
        %v1184 = vpop.f32.mrb[0].mxu0
        %v1185 = vpop.f32.mrb[0].mxu0
        %1186 = vdwg.mxu0
        %1187 = vrot.lane.b32.xlu0 %v1064, 56
        %v1188 = vpop.permute.xlu0 %1187
        %v1190 = vsel %vm791, %v1138, 0
        %v1193 = vsel %vm915, %v1188, 0
        %1195 = vmatprep.subr.bf16.mxu0 0
        %1196 = vmatpush1.bf16.msra.mxu0 %v1193
        %1197 = vmatprep.subr.bf16.mxu0 0
        %1198 = vmatpush1.bf16.msra.mxu0 0
        %1199 = vmatprep.subr.bf16.mxu0 0
        %1200 = vmatpush1.bf16.msra.mxu0 0
        %1201 = vmatprep.subr.bf16.mxu0 0
        %1202 = vmatpush1.bf16.msra.mxu0 0
        %1203 = vmatprep.subr.bf16.mxu0 0
        %1204 = vmatpush1.bf16.msra.mxu0 0
        %1205 = vmatprep.subr.bf16.mxu0 0
        %1206 = vmatpush1.bf16.msra.mxu0 0
        %1207 = vmatprep.subr.bf16.mxu0 0
        %1208 = vmatpush1.bf16.msra.mxu0 0
        %1209 = vmatprep.subr.bf16.mxu0 0
        %1210 = vmatpush1.bf16.msra.mxu0 0
        %1211 = vmatprep.subr.bf16.mxu0 0
        %1212 = vmatpush1.bf16.msra.mxu0 0
        %1213 = vmatprep.subr.bf16.mxu0 0
        %1214 = vmatpush1.bf16.msra.mxu0 0
        %1215 = vmatprep.subr.bf16.mxu0 0
        %1216 = vmatpush1.bf16.msra.mxu0 0
        %1217 = vmatprep.subr.bf16.mxu0 0
        %1218 = vmatpush1.bf16.msra.mxu0 0
        %1219 = vmatprep.subr.bf16.mxu0 0
        %1220 = vmatpush1.bf16.msra.mxu0 0
        %1221 = vmatprep.subr.bf16.mxu0 0
        %1222 = vmatpush1.bf16.msra.mxu0 0
        %1223 = vmatprep.subr.bf16.mxu0 0
        %1224 = vmatpush1.bf16.msra.mxu0 0
        %1225 = vmatprep.subr.bf16.mxu0 0
        %1226 = vmatpush1.bf16.msra.mxu0 0
        %1227 = vmatprep.mubr.bf16.mxu0 0
        %1228 = vmatmul.mubr.bf16.gmra.mrb[0].mxu0 %v1190
        %v1229 = vpop.f32.mrb[0].mxu0
        %v1230 = vadd.f32 0.0, %v1229
        %v1231 = vpop.f32.mrb[0].mxu0
        %v1232 = vpop.f32.mrb[0].mxu0
        %v1233 = vpop.f32.mrb[0].mxu0
        %1234 = vdwg.mxu0
        %v1235 = vpack.c.bf16 %v1230, %v1182
        %1237 = vrot.lane.b32.xlu0 %v1235, 8
        %v1238 = vpop.permute.xlu0 %1237
        %vm1240 = vcmask 130112
        %1241 = vst.msk [vmem:[#allocation4] sm:$0xff] %vm1240, %v1238
        %v1242 = vld [vmem:[#allocation3] sm:$0xff]
        %v1244 = vunpack.c.l.b16 %v1242
        %v1245 = vunpack.c.h.b16 %v1242
        %v1246 = vpack.c.b16 %v1244, %v1244
        %1247 = vrot.lane.b32.xlu0 %v1246, 112
        %v1248 = vpop.permute.xlu0 %1247
        %1249 = vrot.lane.b32.xlu0 %v1246, 80
        %v1250 = vpop.permute.xlu0 %1249
        %v1252 = vsel %vm791, %v1248, 0
        %v1255 = vsel %vm791, %v1250, 0
        %1257 = vmatprep.subr.bf16.mxu0 0
        %1258 = vmatpush1.bf16.xpose.msra.mxu0 %v1255
        %1259 = vmatprep.subr.bf16.mxu0 0
        %1260 = vmatpush1.bf16.xpose.msra.mxu0 0
        %1261 = vmatprep.subr.bf16.mxu0 0
        %1262 = vmatpush1.bf16.xpose.msra.mxu0 0
        %1263 = vmatprep.subr.bf16.mxu0 0
        %1264 = vmatpush1.bf16.xpose.msra.mxu0 0
        %1265 = vmatprep.subr.bf16.mxu0 0
        %1266 = vmatpush1.bf16.xpose.msra.mxu0 0
        %1267 = vmatprep.subr.bf16.mxu0 0
        %1268 = vmatpush1.bf16.xpose.msra.mxu0 0
        %1269 = vmatprep.subr.bf16.mxu0 0
        %1270 = vmatpush1.bf16.xpose.msra.mxu0 0
        %1271 = vmatprep.subr.bf16.mxu0 0
        %1272 = vmatpush1.bf16.xpose.msra.mxu0 0
        %1273 = vmatprep.subr.bf16.mxu0 0
        %1274 = vmatpush1.bf16.xpose.msra.mxu0 0
        %1275 = vmatprep.subr.bf16.mxu0 0
        %1276 = vmatpush1.bf16.xpose.msra.mxu0 0
        %1277 = vmatprep.subr.bf16.mxu0 0
        %1278 = vmatpush1.bf16.xpose.msra.mxu0 0
        %1279 = vmatprep.subr.bf16.mxu0 0
        %1280 = vmatpush1.bf16.xpose.msra.mxu0 0
        %1281 = vmatprep.subr.bf16.mxu0 0
        %1282 = vmatpush1.bf16.xpose.msra.mxu0 0
        %1283 = vmatprep.subr.bf16.mxu0 0
        %1284 = vmatpush1.bf16.xpose.msra.mxu0 0
        %1285 = vmatprep.subr.bf16.mxu0 0
        %1286 = vmatpush1.bf16.xpose.msra.mxu0 0
        %1287 = vmatprep.subr.bf16.mxu0 0
        %1288 = vmatpush1.bf16.xpose.msra.mxu0 0
        %1289 = vmatprep.mubr.bf16.mxu0 0
        %1290 = vmatmul.mubr.bf16.gmra.mrb[0].mxu0 %v1252
        %v1291 = vpop.f32.mrb[0].mxu0
        %v1292 = vadd.f32 %v782, %v1291
        %v1293 = vpop.f32.mrb[0].mxu0
        %v1294 = vpop.f32.mrb[0].mxu0
        %v1295 = vpop.f32.mrb[0].mxu0
        %1296 = vdwg.mxu0
        %v1297 = vpack.c.b16 %v1245, %v1245
        %1298 = vrot.lane.b32.xlu0 %v1297, 112
        %v1299 = vpop.permute.xlu0 %1298
        %1300 = vrot.lane.b32.xlu0 %v1297, 80
        %v1301 = vpop.permute.xlu0 %1300
        %v1303 = vsel %vm791, %v1299, 0
        %v1306 = vsel %vm791, %v1301, 0
        %1308 = vmatprep.subr.bf16.mxu0 0
        %1309 = vmatpush1.bf16.xpose.msra.mxu0 %v1306
        %1310 = vmatprep.subr.bf16.mxu0 0
        %1311 = vmatpush1.bf16.xpose.msra.mxu0 0
        %1312 = vmatprep.subr.bf16.mxu0 0
        %1313 = vmatpush1.bf16.xpose.msra.mxu0 0
        %1314 = vmatprep.subr.bf16.mxu0 0
        %1315 = vmatpush1.bf16.xpose.msra.mxu0 0
        %1316 = vmatprep.subr.bf16.mxu0 0
        %1317 = vmatpush1.bf16.xpose.msra.mxu0 0
        %1318 = vmatprep.subr.bf16.mxu0 0
        %1319 = vmatpush1.bf16.xpose.msra.mxu0 0
        %1320 = vmatprep.subr.bf16.mxu0 0
        %1321 = vmatpush1.bf16.xpose.msra.mxu0 0
        %1322 = vmatprep.subr.bf16.mxu0 0
        %1323 = vmatpush1.bf16.xpose.msra.mxu0 0
        %1324 = vmatprep.subr.bf16.mxu0 0
        %1325 = vmatpush1.bf16.xpose.msra.mxu0 0
        %1326 = vmatprep.subr.bf16.mxu0 0
        %1327 = vmatpush1.bf16.xpose.msra.mxu0 0
        %1328 = vmatprep.subr.bf16.mxu0 0
        %1329 = vmatpush1.bf16.xpose.msra.mxu0 0
        %1330 = vmatprep.subr.bf16.mxu0 0
        %1331 = vmatpush1.bf16.xpose.msra.mxu0 0
        %1332 = vmatprep.subr.bf16.mxu0 0
        %1333 = vmatpush1.bf16.xpose.msra.mxu0 0
        %1334 = vmatprep.subr.bf16.mxu0 0
        %1335 = vmatpush1.bf16.xpose.msra.mxu0 0
        %1336 = vmatprep.subr.bf16.mxu0 0
        %1337 = vmatpush1.bf16.xpose.msra.mxu0 0
        %1338 = vmatprep.subr.bf16.mxu0 0
        %1339 = vmatpush1.bf16.xpose.msra.mxu0 0
        %1340 = vmatprep.mubr.bf16.mxu0 0
        %1341 = vmatmul.mubr.bf16.gmra.mrb[0].mxu0 %v1303
        %v1342 = vpop.f32.mrb[0].mxu0
        %v1343 = vadd.f32 %v786, %v1342
        %v1344 = vpop.f32.mrb[0].mxu0
        %v1345 = vpop.f32.mrb[0].mxu0
        %v1346 = vpop.f32.mrb[0].mxu0
        %1347 = vdwg.mxu0
        %v1348 = vsel %vm791, %v1292, -inf
        %1349 = vmax.xlane.f32.xlu0 %v1348
        %v1350 = vpop.xlane.xlu0 %1349
        %v1351 = vsel %vm791, %v1343, -inf
        %1352 = vmax.xlane.f32.xlu0 %v1351
        %v1353 = vpop.xlane.xlu0 %1352
        %v1354 = vsub.f32 %v1292, %v1350
        %v1355 = vsub.f32 %v1343, %v1353
        %v1356 = vmul.f32 %v1354, 1.442695
        %v1357 = vpow.pop %v1356
        %v1358 = vmul.f32 %v1355, 1.442695
        %v1359 = vpow.pop %v1358
        %v1360 = vsel %vm791, %v1357, 0.0
        %1361 = vadd.xlane.f32.xlu0 %v1360
        %v1362 = vpop.xlane.xlu0 %1361
        %v1363 = vsel %vm791, %v1359, 0.0
        %1364 = vadd.xlane.f32.xlu0 %v1363
        %v1365 = vpop.xlane.xlu0 %1364
        %v1366 = vrcp.pop %v1362
        %v1367 = vrcp.pop %v1365
        %v1368 = vmul.f32 %v1357, %v1366
        %v1369 = vmul.f32 %v1359, %v1367
        %v1370 = vpack.c.bf16 %v1368, %v1368
        %v1371 = vpack.c.bf16 %v1369, %v1369
        %1372 = vrot.lane.b32.xlu0 %v1246, 48
        %v1373 = vpop.permute.xlu0 %1372
        %v1375 = vsel %vm791, %v1370, 0
        %v1378 = vsel %vm915, %v1373, 0
        %1380 = vmatprep.subr.bf16.mxu0 0
        %1381 = vmatpush1.bf16.msra.mxu0 %v1378
        %1382 = vmatprep.subr.bf16.mxu0 0
        %1383 = vmatpush1.bf16.msra.mxu0 0
        %1384 = vmatprep.subr.bf16.mxu0 0
        %1385 = vmatpush1.bf16.msra.mxu0 0
        %1386 = vmatprep.subr.bf16.mxu0 0
        %1387 = vmatpush1.bf16.msra.mxu0 0
        %1388 = vmatprep.subr.bf16.mxu0 0
        %1389 = vmatpush1.bf16.msra.mxu0 0
        %1390 = vmatprep.subr.bf16.mxu0 0
        %1391 = vmatpush1.bf16.msra.mxu0 0
        %1392 = vmatprep.subr.bf16.mxu0 0
        %1393 = vmatpush1.bf16.msra.mxu0 0
        %1394 = vmatprep.subr.bf16.mxu0 0
        %1395 = vmatpush1.bf16.msra.mxu0 0
        %1396 = vmatprep.subr.bf16.mxu0 0
        %1397 = vmatpush1.bf16.msra.mxu0 0
        %1398 = vmatprep.subr.bf16.mxu0 0
        %1399 = vmatpush1.bf16.msra.mxu0 0
        %1400 = vmatprep.subr.bf16.mxu0 0
        %1401 = vmatpush1.bf16.msra.mxu0 0
        %1402 = vmatprep.subr.bf16.mxu0 0
        %1403 = vmatpush1.bf16.msra.mxu0 0
        %1404 = vmatprep.subr.bf16.mxu0 0
        %1405 = vmatpush1.bf16.msra.mxu0 0
        %1406 = vmatprep.subr.bf16.mxu0 0
        %1407 = vmatpush1.bf16.msra.mxu0 0
        %1408 = vmatprep.subr.bf16.mxu0 0
        %1409 = vmatpush1.bf16.msra.mxu0 0
        %1410 = vmatprep.subr.bf16.mxu0 0
        %1411 = vmatpush1.bf16.msra.mxu0 0
        %1412 = vmatprep.mubr.bf16.mxu0 0
        %1413 = vmatmul.mubr.bf16.gmra.mrb[0].mxu0 %v1375
        %v1414 = vpop.f32.mrb[0].mxu0
        %v1415 = vadd.f32 0.0, %v1414
        %v1416 = vpop.f32.mrb[0].mxu0
        %v1417 = vpop.f32.mrb[0].mxu0
        %v1418 = vpop.f32.mrb[0].mxu0
        %1419 = vdwg.mxu0
        %1420 = vrot.lane.b32.xlu0 %v1297, 48
        %v1421 = vpop.permute.xlu0 %1420
        %v1423 = vsel %vm791, %v1371, 0
        %v1426 = vsel %vm915, %v1421, 0
        %1428 = vmatprep.subr.bf16.mxu0 0
        %1429 = vmatpush1.bf16.msra.mxu0 %v1426
        %1430 = vmatprep.subr.bf16.mxu0 0
        %1431 = vmatpush1.bf16.msra.mxu0 0
        %1432 = vmatprep.subr.bf16.mxu0 0
        %1433 = vmatpush1.bf16.msra.mxu0 0
        %1434 = vmatprep.subr.bf16.mxu0 0
        %1435 = vmatpush1.bf16.msra.mxu0 0
        %1436 = vmatprep.subr.bf16.mxu0 0
        %1437 = vmatpush1.bf16.msra.mxu0 0
        %1438 = vmatprep.subr.bf16.mxu0 0
        %1439 = vmatpush1.bf16.msra.mxu0 0
        %1440 = vmatprep.subr.bf16.mxu0 0
        %1441 = vmatpush1.bf16.msra.mxu0 0
        %1442 = vmatprep.subr.bf16.mxu0 0
        %1443 = vmatpush1.bf16.msra.mxu0 0
        %1444 = vmatprep.subr.bf16.mxu0 0
        %1445 = vmatpush1.bf16.msra.mxu0 0
        %1446 = vmatprep.subr.bf16.mxu0 0
        %1447 = vmatpush1.bf16.msra.mxu0 0
        %1448 = vmatprep.subr.bf16.mxu0 0
        %1449 = vmatpush1.bf16.msra.mxu0 0
        %1450 = vmatprep.subr.bf16.mxu0 0
        %1451 = vmatpush1.bf16.msra.mxu0 0
        %1452 = vmatprep.subr.bf16.mxu0 0
        %1453 = vmatpush1.bf16.msra.mxu0 0
        %1454 = vmatprep.subr.bf16.mxu0 0
        %1455 = vmatpush1.bf16.msra.mxu0 0
        %1456 = vmatprep.subr.bf16.mxu0 0
        %1457 = vmatpush1.bf16.msra.mxu0 0
        %1458 = vmatprep.subr.bf16.mxu0 0
        %1459 = vmatpush1.bf16.msra.mxu0 0
        %1460 = vmatprep.mubr.bf16.mxu0 0
        %1461 = vmatmul.mubr.bf16.gmra.mrb[0].mxu0 %v1423
        %v1462 = vpop.f32.mrb[0].mxu0
        %v1463 = vadd.f32 0.0, %v1462
        %v1464 = vpop.f32.mrb[0].mxu0
        %v1465 = vpop.f32.mrb[0].mxu0
        %v1466 = vpop.f32.mrb[0].mxu0
        %1467 = vdwg.mxu0
        %v1468 = vpack.c.bf16 %v1463, %v1415
        %1470 = vrot.lane.b32.xlu0 %v1468, 16
        %v1471 = vpop.permute.xlu0 %1470
        %vm1473 = vcmask 195712
        %1474 = vst.msk [vmem:[#allocation4] sm:$0xff] %vm1473, %v1471
        %v1475 = vld [vmem:[#allocation3] sm:$0xff]
        %v1477 = vunpack.c.l.b16 %v1475
        %v1478 = vunpack.c.h.b16 %v1475
        %v1479 = vpack.c.b16 %v1477, %v1477
        %1480 = vrot.lane.b32.xlu0 %v1479, 104
        %v1481 = vpop.permute.xlu0 %1480
        %1482 = vrot.lane.b32.xlu0 %v1479, 72
        %v1483 = vpop.permute.xlu0 %1482
        %v1485 = vsel %vm791, %v1481, 0
        %v1488 = vsel %vm791, %v1483, 0
        %1490 = vmatprep.subr.bf16.mxu0 0
        %1491 = vmatpush1.bf16.xpose.msra.mxu0 %v1488
        %1492 = vmatprep.subr.bf16.mxu0 0
        %1493 = vmatpush1.bf16.xpose.msra.mxu0 0
        %1494 = vmatprep.subr.bf16.mxu0 0
        %1495 = vmatpush1.bf16.xpose.msra.mxu0 0
        %1496 = vmatprep.subr.bf16.mxu0 0
        %1497 = vmatpush1.bf16.xpose.msra.mxu0 0
        %1498 = vmatprep.subr.bf16.mxu0 0
        %1499 = vmatpush1.bf16.xpose.msra.mxu0 0
        %1500 = vmatprep.subr.bf16.mxu0 0
        %1501 = vmatpush1.bf16.xpose.msra.mxu0 0
        %1502 = vmatprep.subr.bf16.mxu0 0
        %1503 = vmatpush1.bf16.xpose.msra.mxu0 0
        %1504 = vmatprep.subr.bf16.mxu0 0
        %1505 = vmatpush1.bf16.xpose.msra.mxu0 0
        %1506 = vmatprep.subr.bf16.mxu0 0
        %1507 = vmatpush1.bf16.xpose.msra.mxu0 0
        %1508 = vmatprep.subr.bf16.mxu0 0
        %1509 = vmatpush1.bf16.xpose.msra.mxu0 0
        %1510 = vmatprep.subr.bf16.mxu0 0
        %1511 = vmatpush1.bf16.xpose.msra.mxu0 0
        %1512 = vmatprep.subr.bf16.mxu0 0
        %1513 = vmatpush1.bf16.xpose.msra.mxu0 0
        %1514 = vmatprep.subr.bf16.mxu0 0
        %1515 = vmatpush1.bf16.xpose.msra.mxu0 0
        %1516 = vmatprep.subr.bf16.mxu0 0
        %1517 = vmatpush1.bf16.xpose.msra.mxu0 0
        %1518 = vmatprep.subr.bf16.mxu0 0
        %1519 = vmatpush1.bf16.xpose.msra.mxu0 0
        %1520 = vmatprep.subr.bf16.mxu0 0
        %1521 = vmatpush1.bf16.xpose.msra.mxu0 0
        %1522 = vmatprep.mubr.bf16.mxu0 0
        %1523 = vmatmul.mubr.bf16.gmra.mrb[0].mxu0 %v1485
        %v1524 = vpop.f32.mrb[0].mxu0
        %v1525 = vadd.f32 %v782, %v1524
        %v1526 = vpop.f32.mrb[0].mxu0
        %v1527 = vpop.f32.mrb[0].mxu0
        %v1528 = vpop.f32.mrb[0].mxu0
        %1529 = vdwg.mxu0
        %v1530 = vpack.c.b16 %v1478, %v1478
        %1531 = vrot.lane.b32.xlu0 %v1530, 104
        %v1532 = vpop.permute.xlu0 %1531
        %1533 = vrot.lane.b32.xlu0 %v1530, 72
        %v1534 = vpop.permute.xlu0 %1533
        %v1536 = vsel %vm791, %v1532, 0
        %v1539 = vsel %vm791, %v1534, 0
        %1541 = vmatprep.subr.bf16.mxu0 0
        %1542 = vmatpush1.bf16.xpose.msra.mxu0 %v1539
        %1543 = vmatprep.subr.bf16.mxu0 0
        %1544 = vmatpush1.bf16.xpose.msra.mxu0 0
        %1545 = vmatprep.subr.bf16.mxu0 0
        %1546 = vmatpush1.bf16.xpose.msra.mxu0 0
        %1547 = vmatprep.subr.bf16.mxu0 0
        %1548 = vmatpush1.bf16.xpose.msra.mxu0 0
        %1549 = vmatprep.subr.bf16.mxu0 0
        %1550 = vmatpush1.bf16.xpose.msra.mxu0 0
        %1551 = vmatprep.subr.bf16.mxu0 0
        %1552 = vmatpush1.bf16.xpose.msra.mxu0 0
        %1553 = vmatprep.subr.bf16.mxu0 0
        %1554 = vmatpush1.bf16.xpose.msra.mxu0 0
        %1555 = vmatprep.subr.bf16.mxu0 0
        %1556 = vmatpush1.bf16.xpose.msra.mxu0 0
        %1557 = vmatprep.subr.bf16.mxu0 0
        %1558 = vmatpush1.bf16.xpose.msra.mxu0 0
        %1559 = vmatprep.subr.bf16.mxu0 0
        %1560 = vmatpush1.bf16.xpose.msra.mxu0 0
        %1561 = vmatprep.subr.bf16.mxu0 0
        %1562 = vmatpush1.bf16.xpose.msra.mxu0 0
        %1563 = vmatprep.subr.bf16.mxu0 0
        %1564 = vmatpush1.bf16.xpose.msra.mxu0 0
        %1565 = vmatprep.subr.bf16.mxu0 0
        %1566 = vmatpush1.bf16.xpose.msra.mxu0 0
        %1567 = vmatprep.subr.bf16.mxu0 0
        %1568 = vmatpush1.bf16.xpose.msra.mxu0 0
        %1569 = vmatprep.subr.bf16.mxu0 0
        %1570 = vmatpush1.bf16.xpose.msra.mxu0 0
        %1571 = vmatprep.subr.bf16.mxu0 0
        %1572 = vmatpush1.bf16.xpose.msra.mxu0 0
        %1573 = vmatprep.mubr.bf16.mxu0 0
        %1574 = vmatmul.mubr.bf16.gmra.mrb[0].mxu0 %v1536
        %v1575 = vpop.f32.mrb[0].mxu0
        %v1576 = vadd.f32 %v786, %v1575
        %v1577 = vpop.f32.mrb[0].mxu0
        %v1578 = vpop.f32.mrb[0].mxu0
        %v1579 = vpop.f32.mrb[0].mxu0
        %1580 = vdwg.mxu0
        %v1581 = vsel %vm791, %v1525, -inf
        %1582 = vmax.xlane.f32.xlu0 %v1581
        %v1583 = vpop.xlane.xlu0 %1582
        %v1584 = vsel %vm791, %v1576, -inf
        %1585 = vmax.xlane.f32.xlu0 %v1584
        %v1586 = vpop.xlane.xlu0 %1585
        %v1587 = vsub.f32 %v1525, %v1583
        %v1588 = vsub.f32 %v1576, %v1586
        %v1589 = vmul.f32 %v1587, 1.442695
        %v1590 = vpow.pop %v1589
        %v1591 = vmul.f32 %v1588, 1.442695
        %v1592 = vpow.pop %v1591
        %v1593 = vsel %vm791, %v1590, 0.0
        %1594 = vadd.xlane.f32.xlu0 %v1593
        %v1595 = vpop.xlane.xlu0 %1594
        %v1596 = vsel %vm791, %v1592, 0.0
        %1597 = vadd.xlane.f32.xlu0 %v1596
        %v1598 = vpop.xlane.xlu0 %1597
        %v1599 = vrcp.pop %v1595
        %v1600 = vrcp.pop %v1598
        %v1601 = vmul.f32 %v1590, %v1599
        %v1602 = vmul.f32 %v1592, %v1600
        %v1603 = vpack.c.bf16 %v1601, %v1601
        %v1604 = vpack.c.bf16 %v1602, %v1602
        %1605 = vrot.lane.b32.xlu0 %v1479, 40
        %v1606 = vpop.permute.xlu0 %1605
        %v1608 = vsel %vm791, %v1603, 0
        %v1611 = vsel %vm915, %v1606, 0
        %1613 = vmatprep.subr.bf16.mxu0 0
        %1614 = vmatpush1.bf16.msra.mxu0 %v1611
        %1615 = vmatprep.subr.bf16.mxu0 0
        %1616 = vmatpush1.bf16.msra.mxu0 0
        %1617 = vmatprep.subr.bf16.mxu0 0
        %1618 = vmatpush1.bf16.msra.mxu0 0
        %1619 = vmatprep.subr.bf16.mxu0 0
        %1620 = vmatpush1.bf16.msra.mxu0 0
        %1621 = vmatprep.subr.bf16.mxu0 0
        %1622 = vmatpush1.bf16.msra.mxu0 0
        %1623 = vmatprep.subr.bf16.mxu0 0
        %1624 = vmatpush1.bf16.msra.mxu0 0
        %1625 = vmatprep.subr.bf16.mxu0 0
        %1626 = vmatpush1.bf16.msra.mxu0 0
        %1627 = vmatprep.subr.bf16.mxu0 0
        %1628 = vmatpush1.bf16.msra.mxu0 0
        %1629 = vmatprep.subr.bf16.mxu0 0
        %1630 = vmatpush1.bf16.msra.mxu0 0
        %1631 = vmatprep.subr.bf16.mxu0 0
        %1632 = vmatpush1.bf16.msra.mxu0 0
        %1633 = vmatprep.subr.bf16.mxu0 0
        %1634 = vmatpush1.bf16.msra.mxu0 0
        %1635 = vmatprep.subr.bf16.mxu0 0
        %1636 = vmatpush1.bf16.msra.mxu0 0
        %1637 = vmatprep.subr.bf16.mxu0 0
        %1638 = vmatpush1.bf16.msra.mxu0 0
        %1639 = vmatprep.subr.bf16.mxu0 0
        %1640 = vmatpush1.bf16.msra.mxu0 0
        %1641 = vmatprep.subr.bf16.mxu0 0
        %1642 = vmatpush1.bf16.msra.mxu0 0
        %1643 = vmatprep.subr.bf16.mxu0 0
        %1644 = vmatpush1.bf16.msra.mxu0 0
        %1645 = vmatprep.mubr.bf16.mxu0 0
        %1646 = vmatmul.mubr.bf16.gmra.mrb[0].mxu0 %v1608
        %v1647 = vpop.f32.mrb[0].mxu0
        %v1648 = vadd.f32 0.0, %v1647
        %v1649 = vpop.f32.mrb[0].mxu0
        %v1650 = vpop.f32.mrb[0].mxu0
        %v1651 = vpop.f32.mrb[0].mxu0
        %1652 = vdwg.mxu0
        %1653 = vrot.lane.b32.xlu0 %v1530, 40
        %v1654 = vpop.permute.xlu0 %1653
        %v1656 = vsel %vm791, %v1604, 0
        %v1659 = vsel %vm915, %v1654, 0
        %1661 = vmatprep.subr.bf16.mxu0 0
        %1662 = vmatpush1.bf16.msra.mxu0 %v1659
        %1663 = vmatprep.subr.bf16.mxu0 0
        %1664 = vmatpush1.bf16.msra.mxu0 0
        %1665 = vmatprep.subr.bf16.mxu0 0
        %1666 = vmatpush1.bf16.msra.mxu0 0
        %1667 = vmatprep.subr.bf16.mxu0 0
        %1668 = vmatpush1.bf16.msra.mxu0 0
        %1669 = vmatprep.subr.bf16.mxu0 0
        %1670 = vmatpush1.bf16.msra.mxu0 0
        %1671 = vmatprep.subr.bf16.mxu0 0
        %1672 = vmatpush1.bf16.msra.mxu0 0
        %1673 = vmatprep.subr.bf16.mxu0 0
        %1674 = vmatpush1.bf16.msra.mxu0 0
        %1675 = vmatprep.subr.bf16.mxu0 0
        %1676 = vmatpush1.bf16.msra.mxu0 0
        %1677 = vmatprep.subr.bf16.mxu0 0
        %1678 = vmatpush1.bf16.msra.mxu0 0
        %1679 = vmatprep.subr.bf16.mxu0 0
        %1680 = vmatpush1.bf16.msra.mxu0 0
        %1681 = vmatprep.subr.bf16.mxu0 0
        %1682 = vmatpush1.bf16.msra.mxu0 0
        %1683 = vmatprep.subr.bf16.mxu0 0
        %1684 = vmatpush1.bf16.msra.mxu0 0
        %1685 = vmatprep.subr.bf16.mxu0 0
        %1686 = vmatpush1.bf16.msra.mxu0 0
        %1687 = vmatprep.subr.bf16.mxu0 0
        %1688 = vmatpush1.bf16.msra.mxu0 0
        %1689 = vmatprep.subr.bf16.mxu0 0
        %1690 = vmatpush1.bf16.msra.mxu0 0
        %1691 = vmatprep.subr.bf16.mxu0 0
        %1692 = vmatpush1.bf16.msra.mxu0 0
        %1693 = vmatprep.mubr.bf16.mxu0 0
        %1694 = vmatmul.mubr.bf16.gmra.mrb[0].mxu0 %v1656
        %v1695 = vpop.f32.mrb[0].mxu0
        %v1696 = vadd.f32 0.0, %v1695
        %v1697 = vpop.f32.mrb[0].mxu0
        %v1698 = vpop.f32.mrb[0].mxu0
        %v1699 = vpop.f32.mrb[0].mxu0
        %1700 = vdwg.mxu0
        %v1701 = vpack.c.bf16 %v1696, %v1648
        %1703 = vrot.lane.b32.xlu0 %v1701, 24
        %v1704 = vpop.permute.xlu0 %1703
        %vm1706 = vcmask 261312
        %1707 = vst.msk [vmem:[#allocation4] sm:$0xff] %vm1706, %v1704
        %v1708 = vld [vmem:[#allocation4] sm:$0xff]
        %v1709 = vld [vmem:[%s652] sm:$0xf]
        %v1710 = vld [vmem:[%s652 + $0x4] sm:$0xf]
        %v1711 = vld [vmem:[%s652 + $0x8] sm:$0xf]
        %v1712 = vld [vmem:[%s652 + $0xc] sm:$0xf]
        %v1713 = vld [vmem:[%s655] sm:$0x1]
        %v1715 = vlaneseq
        %v1716 = vshrl.u32 %v1715, 7
        %v1717 = vsub.s32 0, %v1716
        %v1718 = vrot.slane %v1713, %v1717
        %v1724 = vunpack.c.l.b16 %v1709
        %v1725 = vunpack.c.l.b16 %v1710
        %v1726 = vunpack.c.l.b16 %v1711
        %v1727 = vunpack.c.l.b16 %v1712
        %v1728 = vpack.c.b16 %v1725, %v1724
        %v1729 = vpack.c.b16 %v1727, %v1726
        %v1733 = vsel %vm721, %v1708, 0
        %1735 = vmatprep.subr.bf16.mxu0 0
        %1736 = vmatpush1.bf16.msra.mxu0 %v1728
        %1737 = vmatprep.subr.bf16.mxu0 0
        %1738 = vmatpush1.bf16.msra.mxu0 %v1729
        %1739 = vmatprep.subr.bf16.mxu0 0
        %1740 = vmatpush1.bf16.msra.mxu0 0
        %1741 = vmatprep.subr.bf16.mxu0 0
        %1742 = vmatpush1.bf16.msra.mxu0 0
        %1743 = vmatprep.subr.bf16.mxu0 0
        %1744 = vmatpush1.bf16.msra.mxu0 0
        %1745 = vmatprep.subr.bf16.mxu0 0
        %1746 = vmatpush1.bf16.msra.mxu0 0
        %1747 = vmatprep.subr.bf16.mxu0 0
        %1748 = vmatpush1.bf16.msra.mxu0 0
        %1749 = vmatprep.subr.bf16.mxu0 0
        %1750 = vmatpush1.bf16.msra.mxu0 0
        %1751 = vmatprep.subr.bf16.mxu0 0
        %1752 = vmatpush1.bf16.msra.mxu0 0
        %1753 = vmatprep.subr.bf16.mxu0 0
        %1754 = vmatpush1.bf16.msra.mxu0 0
        %1755 = vmatprep.subr.bf16.mxu0 0
        %1756 = vmatpush1.bf16.msra.mxu0 0
        %1757 = vmatprep.subr.bf16.mxu0 0
        %1758 = vmatpush1.bf16.msra.mxu0 0
        %1759 = vmatprep.subr.bf16.mxu0 0
        %1760 = vmatpush1.bf16.msra.mxu0 0
        %1761 = vmatprep.subr.bf16.mxu0 0
        %1762 = vmatpush1.bf16.msra.mxu0 0
        %1763 = vmatprep.subr.bf16.mxu0 0
        %1764 = vmatpush1.bf16.msra.mxu0 0
        %1765 = vmatprep.subr.bf16.mxu0 0
        %1766 = vmatpush1.bf16.msra.mxu0 0
        %1767 = vmatprep.mubr.bf16.mxu0 0
        %1768 = vmatmul.mubr.bf16.gmra.mrb[0].mxu0 %v1733
        %v1769 = vpop.f32.mrb[0].mxu0
        %v1770 = vadd.f32 %v1718, %v1769
        %v1771 = vpop.f32.mrb[0].mxu0
        %v1772 = vpop.f32.mrb[0].mxu0
        %v1773 = vadd.f32 %v1718, %v1772
        %v1774 = vpop.f32.mrb[0].mxu0
        %1775 = vdwg.mxu0
        %v1776 = vadd.f32 %v695, %v1770
        %v1777 = vadd.f32 %v696, %v1773
        %v1778 = vld [vmem:[%s674] sm:$0x1]
        %v1779 = vld [vmem:[%s677] sm:$0x1]
        %v1780 = vsel %vm721, %v1776, 0.0
        %1781 = vadd.xlane.f32.xlu0 %v1780
        %v1782 = vpop.xlane.xlu0 %1781
        %v1783 = vsel %vm721, %v1777, 0.0
        %1784 = vadd.xlane.f32.xlu0 %v1783
        %v1785 = vpop.xlane.xlu0 %1784
        %v1786 = vrcp.pop 32.0
        %v1787 = vmul.f32 %v1782, %v1786
        %v1788 = vmul.f32 %v1785, %v1786
        %v1789 = vsub.f32 %v1776, %v1787
        %v1790 = vsub.f32 %v1777, %v1788
        %v1791 = vmul.f32 %v1789, %v1789
        %v1792 = vmul.f32 %v1790, %v1790
        %v1793 = vsel %vm721, %v1791, 0.0
        %1794 = vadd.xlane.f32.xlu0 %v1793
        %v1795 = vpop.xlane.xlu0 %1794
        %v1796 = vsel %vm721, %v1792, 0.0
        %1797 = vadd.xlane.f32.xlu0 %v1796
        %v1798 = vpop.xlane.xlu0 %1797
        %v1799 = vmul.f32 %v1795, %v1786
        %v1800 = vmul.f32 %v1798, %v1786
        %v1801 = vadd.f32 %v1799, 1e-06
        %v1802 = vadd.f32 %v1800, 1e-06
        %v1803 = vrsqrt.pop %v1801
        %v1804 = vrsqrt.pop %v1802
        %v1805 = vmul.f32 %v1789, %v1803
        %v1806 = vmul.f32 %v1790, %v1804
        %v1808 = vlaneseq
        %v1809 = vshrl.u32 %v1808, 7
        %v1810 = vsub.s32 0, %v1809
        %v1811 = vrot.slane %v1778, %v1810
        %v1813 = vmul.f32 %v1805, %v1811
        %v1814 = vmul.f32 %v1806, %v1811
        %v1816 = vlaneseq
        %v1817 = vshrl.u32 %v1816, 7
        %v1818 = vsub.s32 0, %v1817
        %v1819 = vrot.slane %v1779, %v1818
        %v1821 = vadd.f32 %v1813, %v1819
        %v1822 = vadd.f32 %v1814, %v1819
        %v1823 = vpack.c.bf16 %v1822, %v1821
        %v1824 = vld [vmem:[%s663] sm:$0x1]
        %v1825 = vld [vmem:[%s660] sm:$0xf]
        %v1826 = vld [vmem:[%s660 + $0x4] sm:$0xf]
        %v1827 = vld [vmem:[%s660 + $0x8] sm:$0xf]
        %v1828 = vld [vmem:[%s660 + $0xc] sm:$0xf]
        %v1830 = vlaneseq
        %v1831 = vshrl.u32 %v1830, 7
        %v1832 = vsub.s32 0, %v1831
        %v1833 = vrot.slane %v1824, %v1832
        %v1839 = vunpack.c.l.b16 %v1825
        %v1840 = vunpack.c.l.b16 %v1826
        %v1841 = vunpack.c.l.b16 %v1827
        %v1842 = vunpack.c.l.b16 %v1828
        %v1843 = vpack.c.b16 %v1840, %v1839
        %v1844 = vpack.c.b16 %v1842, %v1841
        %v1848 = vsel %vm721, %v1823, 0
        %1850 = vmatprep.subr.bf16.mxu0 0
        %1851 = vmatpush1.bf16.msra.mxu0 %v1843
        %1852 = vmatprep.subr.bf16.mxu0 0
        %1853 = vmatpush1.bf16.msra.mxu0 %v1844
        %1854 = vmatprep.subr.bf16.mxu0 0
        %1855 = vmatpush1.bf16.msra.mxu0 0
        %1856 = vmatprep.subr.bf16.mxu0 0
        %1857 = vmatpush1.bf16.msra.mxu0 0
        %1858 = vmatprep.subr.bf16.mxu0 0
        %1859 = vmatpush1.bf16.msra.mxu0 0
        %1860 = vmatprep.subr.bf16.mxu0 0
        %1861 = vmatpush1.bf16.msra.mxu0 0
        %1862 = vmatprep.subr.bf16.mxu0 0
        %1863 = vmatpush1.bf16.msra.mxu0 0
        %1864 = vmatprep.subr.bf16.mxu0 0
        %1865 = vmatpush1.bf16.msra.mxu0 0
        %1866 = vmatprep.subr.bf16.mxu0 0
        %1867 = vmatpush1.bf16.msra.mxu0 0
        %1868 = vmatprep.subr.bf16.mxu0 0
        %1869 = vmatpush1.bf16.msra.mxu0 0
        %1870 = vmatprep.subr.bf16.mxu0 0
        %1871 = vmatpush1.bf16.msra.mxu0 0
        %1872 = vmatprep.subr.bf16.mxu0 0
        %1873 = vmatpush1.bf16.msra.mxu0 0
        %1874 = vmatprep.subr.bf16.mxu0 0
        %1875 = vmatpush1.bf16.msra.mxu0 0
        %1876 = vmatprep.subr.bf16.mxu0 0
        %1877 = vmatpush1.bf16.msra.mxu0 0
        %1878 = vmatprep.subr.bf16.mxu0 0
        %1879 = vmatpush1.bf16.msra.mxu0 0
        %1880 = vmatprep.subr.bf16.mxu0 0
        %1881 = vmatpush1.bf16.msra.mxu0 0
        %1882 = vmatprep.mubr.bf16.mxu0 0
        %1883 = vmatmul.mubr.bf16.gmra.mrb[0].mxu0 %v1848
        %v1884 = vpop.f32.mrb[0].mxu0
        %v1885 = vadd.f32 %v1833, %v1884
        %v1886 = vpop.f32.mrb[0].mxu0
        %v1887 = vpop.f32.mrb[0].mxu0
        %v1888 = vadd.f32 %v1833, %v1887
        %v1889 = vpop.f32.mrb[0].mxu0
        %1890 = vdwg.mxu0
        %v1891 = vmax.f32 %v1885, 0.0
        %v1892 = vmax.f32 %v1888, 0.0
        %v1893 = vpack.c.bf16 %v1892, %v1891
        %v1894 = vld [vmem:[%s668] sm:$0xf]
        %v1895 = vld [vmem:[%s668 + $0x4] sm:$0xf]
        %v1896 = vld [vmem:[%s668 + $0x8] sm:$0xf]
        %v1897 = vld [vmem:[%s668 + $0xc] sm:$0xf]
        %v1898 = vld [vmem:[%s668 + $0x10] sm:$0xf]
        %v1899 = vld [vmem:[%s668 + $0x14] sm:$0xf]
        %v1900 = vld [vmem:[%s668 + $0x18] sm:$0xf]
        %v1901 = vld [vmem:[%s668 + $0x1c] sm:$0xf]
        %v1902 = vld [vmem:[%s668 + $0x20] sm:$0xf]
        %v1903 = vld [vmem:[%s668 + $0x24] sm:$0xf]
        %v1904 = vld [vmem:[%s668 + $0x28] sm:$0xf]
        %v1905 = vld [vmem:[%s668 + $0x2c] sm:$0xf]
        %v1906 = vld [vmem:[%s668 + $0x30] sm:$0xf]
        %v1907 = vld [vmem:[%s668 + $0x34] sm:$0xf]
        %v1908 = vld [vmem:[%s668 + $0x38] sm:$0xf]
        %v1909 = vld [vmem:[%s668 + $0x3c] sm:$0xf]
        %v1910 = vld [vmem:[%s671] sm:$0x1]
        %v1912 = vlaneseq
        %v1913 = vshrl.u32 %v1912, 7
        %v1914 = vsub.s32 0, %v1913
        %v1915 = vrot.slane %v1910, %v1914
        %v1933 = vunpack.c.l.b16 %v1894
        %v1934 = vunpack.c.l.b16 %v1895
        %v1935 = vunpack.c.l.b16 %v1896
        %v1936 = vunpack.c.l.b16 %v1897
        %v1937 = vunpack.c.l.b16 %v1898
        %v1938 = vunpack.c.l.b16 %v1899
        %v1939 = vunpack.c.l.b16 %v1900
        %v1940 = vunpack.c.l.b16 %v1901
        %v1941 = vunpack.c.l.b16 %v1902
        %v1942 = vunpack.c.l.b16 %v1903
        %v1943 = vunpack.c.l.b16 %v1904
        %v1944 = vunpack.c.l.b16 %v1905
        %v1945 = vunpack.c.l.b16 %v1906
        %v1946 = vunpack.c.l.b16 %v1907
        %v1947 = vunpack.c.l.b16 %v1908
        %v1948 = vunpack.c.l.b16 %v1909
        %v1949 = vpack.c.b16 %v1934, %v1933
        %v1950 = vpack.c.b16 %v1936, %v1935
        %v1951 = vpack.c.b16 %v1938, %v1937
        %v1952 = vpack.c.b16 %v1940, %v1939
        %v1953 = vpack.c.b16 %v1942, %v1941
        %v1954 = vpack.c.b16 %v1944, %v1943
        %v1955 = vpack.c.b16 %v1946, %v1945
        %v1956 = vpack.c.b16 %v1948, %v1947
        %1965 = vmatprep.subr.bf16.mxu0 0
        %1966 = vmatpush1.bf16.msra.mxu0 %v1949
        %1967 = vmatprep.subr.bf16.mxu0 0
        %1968 = vmatpush1.bf16.msra.mxu0 %v1950
        %1969 = vmatprep.subr.bf16.mxu0 0
        %1970 = vmatpush1.bf16.msra.mxu0 %v1951
        %1971 = vmatprep.subr.bf16.mxu0 0
        %1972 = vmatpush1.bf16.msra.mxu0 %v1952
        %1973 = vmatprep.subr.bf16.mxu0 0
        %1974 = vmatpush1.bf16.msra.mxu0 %v1953
        %1975 = vmatprep.subr.bf16.mxu0 0
        %1976 = vmatpush1.bf16.msra.mxu0 %v1954
        %1977 = vmatprep.subr.bf16.mxu0 0
        %1978 = vmatpush1.bf16.msra.mxu0 %v1955
        %1979 = vmatprep.subr.bf16.mxu0 0
        %1980 = vmatpush1.bf16.msra.mxu0 %v1956
        %1981 = vmatprep.subr.bf16.mxu0 0
        %1982 = vmatpush1.bf16.msra.mxu0 0
        %1983 = vmatprep.subr.bf16.mxu0 0
        %1984 = vmatpush1.bf16.msra.mxu0 0
        %1985 = vmatprep.subr.bf16.mxu0 0
        %1986 = vmatpush1.bf16.msra.mxu0 0
        %1987 = vmatprep.subr.bf16.mxu0 0
        %1988 = vmatpush1.bf16.msra.mxu0 0
        %1989 = vmatprep.subr.bf16.mxu0 0
        %1990 = vmatpush1.bf16.msra.mxu0 0
        %1991 = vmatprep.subr.bf16.mxu0 0
        %1992 = vmatpush1.bf16.msra.mxu0 0
        %1993 = vmatprep.subr.bf16.mxu0 0
        %1994 = vmatpush1.bf16.msra.mxu0 0
        %1995 = vmatprep.subr.bf16.mxu0 0
        %1996 = vmatpush1.bf16.msra.mxu0 0
        %1997 = vmatprep.mubr.bf16.mxu0 0
        %1998 = vmatmul.mubr.bf16.gmra.mrb[0].mxu0 %v1893
        %v1999 = vpop.f32.mrb[0].mxu0
        %v2000 = vadd.f32 %v1915, %v1999
        %v2001 = vpop.f32.mrb[0].mxu0
        %v2002 = vpop.f32.mrb[0].mxu0
        %v2003 = vadd.f32 %v1915, %v2002
        %v2004 = vpop.f32.mrb[0].mxu0
        %2005 = vdwg.mxu0
        %v2006 = vadd.f32 %v1821, %v2000
        %v2007 = vadd.f32 %v1822, %v2003
        %v2008 = vld [vmem:[%s680] sm:$0x1]
        %v2009 = vld [vmem:[%s683] sm:$0x1]
        %v2010 = vsel %vm721, %v2006, 0.0
        %2011 = vadd.xlane.f32.xlu0 %v2010
        %v2012 = vpop.xlane.xlu0 %2011
        %v2013 = vsel %vm721, %v2007, 0.0
        %2014 = vadd.xlane.f32.xlu0 %v2013
        %v2015 = vpop.xlane.xlu0 %2014
        %v2016 = vmul.f32 %v2012, %v1786
        %v2017 = vmul.f32 %v2015, %v1786
        %v2018 = vsub.f32 %v2006, %v2016
        %v2019 = vsub.f32 %v2007, %v2017
        %v2020 = vmul.f32 %v2018, %v2018
        %v2021 = vmul.f32 %v2019, %v2019
        %v2022 = vsel %vm721, %v2020, 0.0
        %2023 = vadd.xlane.f32.xlu0 %v2022
        %v2024 = vpop.xlane.xlu0 %2023
        %v2025 = vsel %vm721, %v2021, 0.0
        %2026 = vadd.xlane.f32.xlu0 %v2025
        %v2027 = vpop.xlane.xlu0 %2026
        %v2028 = vmul.f32 %v2024, %v1786
        %v2029 = vmul.f32 %v2027, %v1786
        %v2030 = vadd.f32 %v2028, 1e-06
        %v2031 = vadd.f32 %v2029, 1e-06
        %v2032 = vrsqrt.pop %v2030
        %v2033 = vrsqrt.pop %v2031
        %v2034 = vmul.f32 %v2018, %v2032
        %v2035 = vmul.f32 %v2019, %v2033
        %v2037 = vlaneseq
        %v2038 = vshrl.u32 %v2037, 7
        %v2039 = vsub.s32 0, %v2038
        %v2040 = vrot.slane %v2008, %v2039
        %v2042 = vmul.f32 %v2034, %v2040
        %v2043 = vmul.f32 %v2035, %v2040
        %v2045 = vlaneseq
        %v2046 = vshrl.u32 %v2045, 7
        %v2047 = vsub.s32 0, %v2046
        %v2048 = vrot.slane %v2009, %v2047
        %v2050 = vadd.f32 %v2042, %v2048
        %v2051 = vadd.f32 %v2043, %v2048
        %p2052 = scmp.lt.s32.totalorder %s31, 1
        // Predicated region
        $region81: #{_encoder_apply.1} parent=75 // pred_check
          %p2053 = pneg %p2052
        $region82: #{_encoder_apply.1} parent=75 // pred_check_branch
          %2055 = sbr.rel (%p2053) target = $region84
        $region83: #{_encoder_apply.1} parent=75 // pred_region
          %2056 = vst.msk [vmem:[#allocation2] sm:$0xff] %vm721, %v2050
          %2057 = vst.msk [vmem:[#allocation2 + $0x8] sm:$0xff] %vm721, %v2051
        $region84: #{_encoder_apply.1} parent=75 // pred_fallthru
          _
        %p2058 = scmp.eq.s32.totalorder %s31, 1
        // Predicated region
        $region85: #{_encoder_apply.1} parent=75 // pred_check
          %p2059 = pneg %p2058
        $region86: #{_encoder_apply.1} parent=75 // pred_check_branch
          %2061 = sbr.rel (%p2059) target = $region88
        $region87: #{_encoder_apply.1} parent=75 // pred_region
          %2062 = vst.msk [vmem:[#allocation5] sm:$0xff] %vm721, %v2050
          %2063 = vst.msk [vmem:[#allocation5 + $0x8] sm:$0xff] %vm721, %v2051
        $region88: #{_encoder_apply.1} parent=75 // pred_fallthru
          _
        // Predicated region
        $region89: #{_encoder_apply.1} parent=75 // pred_check
          %p2064 = pneg %p420
        $region90: #{_encoder_apply.1} parent=75 // pred_check_branch
          %2066 = sbr.rel (%p2064) target = $region92
        $region91: #{_encoder_apply.1} parent=75 // pred_region
          %s2067 = smul.u32 2, %s30
          %s2069 = ssub.s32 256, 256
          %2070 = vsyncadd [#allocation6], %s2069
          %s2071 = smul.addr %s2067, 128
          %s2072 = scalar_lea.hbm %s14, %s2071
          %s2073 = sshll.u32 [#allocation5], 4
          %s2074 = int_to_ptr.vmem [resolvable:$true] %s2073
          %2079 = dma.vmem_to_hbm [thread:$0]  %s2074, 256, %s2072, [#allocation6], 128, 128, 8
        $region92: #{_encoder_apply.1} parent=75 // pred_fallthru
          _
        // Predicated region
        $region93: #{_encoder_apply.1} parent=75 // pred_check
          %p2080 = pneg %p420
        $region94: #{_encoder_apply.1} parent=75 // pred_check_branch
          %2082 = sbr.rel (%p2080) target = $region96
        $region95: #{_encoder_apply.1} parent=75 // pred_region
          %2083 = dma.done [#allocation6], 256
        $region96: #{_encoder_apply.1} parent=75 // pred_fallthru
          _
      $region76: #{_encoder_apply.1} parent=5 // pred_fallthru
        _
      %p2084 = scmp.le.s32.totalorder 2, %s21
      // Predicated region
      $region97: #{_encoder_apply.1} parent=5 // pred_check
        %p2085 = pneg %p2084
      $region98: #{_encoder_apply.1} parent=5 // pred_check_branch
        %2087 = sbr.rel (%p2085) target = $region100
      $region99: #{_encoder_apply.1} parent=5 // pred_region
        %s2088 = ssub.s32 %s21, 2
      $region100: #{_encoder_apply.1} parent=5 // pred_fallthru
        _
    $region6: #{_encoder_apply.1} parent=1 // loop_footer
      %s25 = sadd.s32 1, %s21
    $region7: #{_encoder_apply.1} parent=1 // loop_footer_branch
      %20 = sbr.rel target = $region3
    $region8: #{_encoder_apply.1} parent=1 // loop_exit
      _
    %2089 = vsyncpa [#allocation6], 1
    %s2090 = scalar_lea.sflag [#allocation6], 1
    %2091 = vsyncpa %s2090, 1

</llo_original>
